<compile_context>
chip_gen: v7x
topology: tpu7x:2x2x1
jax: 0.10.0
libtpu: 0.0.40
codegen_flags: <defaults>
</compile_context>

<pallas_src>
import functools

import jax
import jax.numpy as jnp
from jax.experimental import pallas as pl
from jax.experimental.pallas import tpu as pltpu

EPS = 1e-5
LANE = 128         # channel axis padded to a multiple of the 128-lane width
MAX_TILE = 1024    # output rows per grid step (multiple of 128; per-gen tunable)


def _round_up(x, m):
    return (x + m - 1) // m * m


def _cdiv(a, b):
    return -(-a // b)


def _pad_vec(v, to):
    return jnp.pad(v.astype(jnp.float32), (0, to - v.shape[0]))


# --------------------------------------------------------------------------
# Kernel 1: conv as a single concat-K matmul over an auto-pipelined body+halo
# slab, optional fused "BN-apply + ReLU" prologue, optional second output
# segment (fused 1x1 downsample conv), packed per-tile BN partial statistics.
#
# Grid = (batch n, row-tile i).  Output row j of tile i holds the conv output
# at position  i*tile + j - seg_shift[s]  for output segment s; the per-conv
# left padding is baked into the input storage layout so every block offset is
# 8-aligned and the BlockSpec pipeline overlaps all HBM traffic with compute.
# --------------------------------------------------------------------------
def _conv_kernel(*refs, K, n_seg, cpseg, tile, l_out, seg_shift,
                 fuse_prologue, in_shift, l_in):
    if fuse_prologue:
        body_ref, halo_ref, w_ref, scale_ref, shift_ref = refs[:5]
        out_refs = refs[5:]
    else:
        body_ref, halo_ref, w_ref = refs[:3]
        out_refs = refs[3:]
    y_refs = out_refs[:n_seg]
    stats_ref = out_refs[n_seg]

    i = pl.program_id(1)
    cdt = body_ref.dtype
    cin_p = body_ref.shape[2]
    W = n_seg * cpseg

    # Input slab: tile rows (body) + 8 halo rows, both auto-pipelined.
    slab = jnp.concatenate([body_ref[0], halo_ref[0]], axis=0)      # (tile+8, Cin_p)

    if fuse_prologue:
        # Fused "BN-apply + ReLU" of the previous conv's output.  Rows outside
        # the valid input range (virtual conv zero padding / never-written
        # margin rows) are zeroed both before and after the affine + ReLU.
        rows = tile + 8
        pos = jax.lax.broadcasted_iota(jnp.int32, (rows, cin_p), 0) + i * tile
        valid = (pos >= in_shift) & (pos < in_shift + l_in)
        v = jnp.where(valid, slab.astype(jnp.float32), 0.0)
        v = jnp.where(valid,
                      jnp.maximum(v * scale_ref[...] + shift_ref[...], 0.0), 0.0)
        slab = v.astype(cdt)

    # In-kernel "im2col": one matmul, K*Cin_p-deep contraction, f32 accumulate.
    xcat = jnp.concatenate([slab[k:k + tile, :] for k in range(K)], axis=1)
    acc = jnp.dot(xcat, w_ref[...], preferred_element_type=jnp.float32)  # (tile, W)

    # Lane-dense output tiles (one per output segment).
    for s in range(n_seg):
        y_refs[s][0] = acc[:, s * cpseg:(s + 1) * cpseg].astype(y_refs[s].dtype)

    # Packed per-tile BN partial statistics: row 0 = sum, row 1 = sum of squares
    # (invalid output positions masked out per segment).
    pos_o = jax.lax.broadcasted_iota(jnp.int32, (tile, W), 0) + i * tile
    if n_seg == 1:
        lo = seg_shift[0]
    else:
        col = jax.lax.broadcasted_iota(jnp.int32, (tile, W), 1)
        lo = jnp.where(col < cpseg, seg_shift[0], seg_shift[1])
    valid_o = (pos_o >= lo) & (pos_o < lo + l_out)
    am = jnp.where(valid_o, acc, 0.0)
    s_row = jnp.sum(am, axis=0, keepdims=True)
    q_row = jnp.sum(am * am, axis=0, keepdims=True)
    r8 = jax.lax.broadcasted_iota(jnp.int32, (8, W), 0)
    blk = jnp.where(r8 == 0, s_row, 0.0) + jnp.where(r8 == 1, q_row, 0.0)
    stats_ref[...] = blk[None, None]


def _conv_pallas(x_store, wcat, *, K, n_seg, cpseg, tile, nt, l_out, seg_shift,
                 prologue=None, in_shift=0, l_in=0, out_dtype, y_rows):
    N, R, cin_p = x_store.shape
    W = n_seg * cpseg
    assert R == nt * tile + 8
    assert len(seg_shift) == n_seg and len(y_rows) == n_seg and n_seg in (1, 2)
    assert wcat.shape == (K * cin_p, W)
    fuse = prologue is not None

    kernel = functools.partial(
        _conv_kernel, K=K, n_seg=n_seg, cpseg=cpseg, tile=tile, l_out=l_out,
        seg_shift=tuple(seg_shift), fuse_prologue=fuse,
        in_shift=in_shift, l_in=l_in)

    tb = tile // 8
    in_specs = [
        pl.BlockSpec((1, tile, cin_p), lambda n, i: (n, i, 0)),           # body
        pl.BlockSpec((1, 8, cin_p), lambda n, i: (n, (i + 1) * tb, 0)),   # halo
        pl.BlockSpec((K * cin_p, W), lambda n, i: (0, 0)),                # weights
    ]
    args = [x_store, x_store, wcat]
    if fuse:
        scale, shift = prologue
        ch = pl.BlockSpec((1, cin_p), lambda n, i: (0, 0))
        in_specs += [ch, ch]
        args += [scale.reshape(1, cin_p).astype(jnp.float32),
                 shift.reshape(1, cin_p).astype(jnp.float32)]

    out_shape = tuple(jax.ShapeDtypeStruct((N, r, cpseg), out_dtype) for r in y_rows) \
        + (jax.ShapeDtypeStruct((N, nt, 8, W), jnp.float32),)
    out_specs = tuple(pl.BlockSpec((1, tile, cpseg), lambda n, i: (n, i, 0))
                      for _ in y_rows) \
        + (pl.BlockSpec((1, 1, 8, W), lambda n, i: (n, i, 0, 0)),)

    return pl.pallas_call(
        kernel,
        grid=(N, nt),
        in_specs=in_specs,
        out_specs=out_specs,
        out_shape=out_shape,
        compiler_params=pltpu.CompilerParams(
            dimension_semantics=("parallel", "parallel")),
    )(*args)


# --------------------------------------------------------------------------
# Kernel 2: fused final epilogue  relu(BN2(y2) [+ BN_ds(y_ds)])
# --------------------------------------------------------------------------
def _bn_add_relu_kernel(*refs, has_res):
    if has_res:
        y_ref, sc_ref, sh_ref, r_ref, rsc_ref, rsh_ref, o_ref = refs
    else:
        y_ref, sc_ref, sh_ref, o_ref = refs
    v = y_ref[0].astype(jnp.float32) * sc_ref[...] + sh_ref[...]
    if has_res:
        v = v + r_ref[0].astype(jnp.float32) * rsc_ref[...] + rsh_ref[...]
    o_ref[0] = jnp.maximum(v, 0.0).astype(o_ref.dtype)


def _bn_add_relu_pallas(y, scale, shift, res=None, res_scale=None,
                        res_shift=None, *, tile, nt):
    N, _, Cp = y.shape
    has_res = res is not None
    kernel = functools.partial(_bn_add_relu_kernel, has_res=has_res)
    vec = pl.BlockSpec((1, tile, Cp), lambda n, i: (n, i, 0))
    ch = pl.BlockSpec((1, Cp), lambda n, i: (0, 0))
    in_specs = [vec, ch, ch]
    args = [y, scale.reshape(1, Cp), shift.reshape(1, Cp)]
    if has_res:
        in_specs += [vec, ch, ch]
        args += [res, res_scale.reshape(1, Cp), res_shift.reshape(1, Cp)]
    return pl.pallas_call(
        kernel,
        grid=(N, nt),
        in_specs=in_specs,
        out_specs=pl.BlockSpec((1, tile, Cp), lambda n, i: (n, i, 0)),
        out_shape=jax.ShapeDtypeStruct((N, nt * tile, Cp), jnp.float32),
        compiler_params=pltpu.CompilerParams(
            dimension_semantics=("parallel", "parallel")),
    )(*args)


# --------------------------------------------------------------------------
# Tiny XLA glue: fold batch statistics into per-channel (scale, shift)
# --------------------------------------------------------------------------
def _bn_fold(s, q, count, gamma_p, beta_p):
    mean = s / count
    var = jnp.maximum(q / count - mean * mean, 0.0)   # biased variance (PyTorch fwd)
    inv = jax.lax.rsqrt(var + EPS)
    scale = gamma_p * inv
    shift = beta_p - mean * scale
    return scale, shift


# --------------------------------------------------------------------------
# Weight / input preparation (one-time layout plumbing, pure JAX)
# --------------------------------------------------------------------------
def _prep_w_taps(w_oik, cin_p, cout_p, dtype):
    """PyTorch (Cout, Cin, K) -> (K*Cin_p, Cout_p), tap-major rows (stride 1)."""
    Cout, Cin, K = w_oik.shape
    w = jnp.transpose(w_oik, (2, 1, 0))                              # (K, Cin, Cout)
    w = jnp.pad(w, ((0, 0), (0, cin_p - Cin), (0, cout_p - Cout)))
    return w.reshape(K * cin_p, cout_p).astype(dtype)


def _prep_w_ds_fused(w1_oik, wd_oik, cin_p, cout_p, dtype):
    """conv1 (k5,s4,p2) + downsample (k1,s4,p0) after space-to-depth:
       2 taps over 4*Cin grouped channels, 2 output segments [conv1 | ds]."""
    Cout, Cin, _ = w1_oik.shape
    w5 = jnp.transpose(w1_oik, (2, 1, 0))                            # (5, Cin, Cout)
    z = jnp.zeros((Cin, Cout), w5.dtype)
    tap0 = jnp.concatenate([w5[0], w5[1], w5[2], w5[3]], axis=0)     # phases 0..3
    tap1 = jnp.concatenate([w5[4], z, z, z], axis=0)
    wc1 = jnp.stack([tap0, tap1], axis=0)                            # (2, 4Cin, Cout)
    wd0 = jnp.transpose(wd_oik[:, :, 0])                             # (Cin, Cout)
    wcd = jnp.stack([jnp.concatenate([z, z, z, z], axis=0),
                     jnp.concatenate([z, z, wd0, z], axis=0)], axis=0)  # phase 2, tap 1

    def pad(w):
        return jnp.pad(w, ((0, 0), (0, cin_p - 4 * Cin), (0, cout_p - Cout)))

    wcat = jnp.concatenate([pad(wc1), pad(wcd)], axis=2)             # (2, Cin_p, 2*Cout_p)
    return wcat.reshape(2 * cin_p, 2 * cout_p).astype(dtype)


def _prep_x_s1(x_ncl, tile, nt, cin_p, dtype):
    """Same-channel path: NCL -> (N, nt*tile+8, Cin_p); storage row s holds the
    conv1-padded input position s-1 (2 leading zero rows: output shift + pad)."""
    N, Cin, L = x_ncl.shape
    rows = nt * tile + 8
    x = jnp.transpose(x_ncl, (0, 2, 1))
    x = jnp.pad(x, ((0, 0), (2, rows - 2 - L), (0, 0)))
    x = jnp.pad(x, ((0, 0), (0, 0), (0, cin_p - Cin)))
    return x.astype(dtype)


def _prep_x_s4(x_ncl, tile, nt, cin_p, dtype):
    """Downsample path: NCL -> space-to-depth groups of 4 (stride folded);
    storage group s holds padded group s-1 (6 leading zero rows pre-grouping)."""
    N, Cin, L = x_ncl.shape
    g_rows = nt * tile + 8
    rows = 4 * g_rows
    x = jnp.transpose(x_ncl, (0, 2, 1))
    x = jnp.pad(x, ((0, 0), (6, rows - 6 - L), (0, 0)))
    x = x.reshape(N, g_rows, 4 * Cin)
    x = jnp.pad(x, ((0, 0), (0, 0), (0, cin_p - 4 * Cin)))
    return x.astype(dtype)


# --------------------------------------------------------------------------
# BasicBlock parameters + forward
# --------------------------------------------------------------------------
def init_basic_block(key, in_channel, out_channel):
    ks = jax.random.split(key, 10)
    k1 = 3 if in_channel == out_channel else 5
    params = {
        'conv1_w': 0.1 * jax.random.normal(ks[0], (out_channel, in_channel, k1), jnp.float32),
        'conv1_b': 0.1 * jax.random.normal(ks[1], (out_channel,), jnp.float32),
        'conv2_w': 0.1 * jax.random.normal(ks[2], (out_channel, out_channel, 3), jnp.float32),
        'conv2_b': 0.1 * jax.random.normal(ks[3], (out_channel,), jnp.float32),
        'bn_g': 1.0 + 0.1 * jax.random.normal(ks[4], (out_channel,), jnp.float32),
        'bn_b': 0.1 * jax.random.normal(ks[5], (out_channel,), jnp.float32),
    }
    if in_channel != out_channel:
        params['ds_w'] = 0.1 * jax.random.normal(ks[6], (out_channel, in_channel, 1), jnp.float32)
        params['ds_b'] = 0.1 * jax.random.normal(ks[7], (out_channel,), jnp.float32)
        params['ds_bn_g'] = 1.0 + 0.1 * jax.random.normal(ks[8], (out_channel,), jnp.float32)
        params['ds_bn_b'] = 0.1 * jax.random.normal(ks[9], (out_channel,), jnp.float32)
    return params


def basic_block_forward_pallas(params, x_ncl, *, compute_dtype=jnp.bfloat16,
                               max_tile=MAX_TILE):
    """Forward of BasicBlock. x_ncl: (N, C_in, L); returns (N, C_out, L_out) f32."""
    N, Cin, L = x_ncl.shape
    Cout = params['conv1_w'].shape[0]
    downsample = 'ds_w' in params

    L_out = (L - 1) // 4 + 1 if downsample else L     # conv1: (k5,s4,p2) / (k3,s1,p1)
    Cout_p = _round_up(Cout, LANE)
    count = N * L_out

    # Row-tile selection: rows_needed covers y1's +1 output shift; keep tiles a
    # multiple of 8 (or of 128 when tiled) and keep N*nt >= 2 for v7x's 2 cores.
    rows_needed = L_out + 1
    nt = _cdiv(rows_needed, max_tile)
    if N * nt < 2 and rows_needed >= 2 * LANE:
        nt = 2
    if nt == 1:
        tile = _round_up(rows_needed, 8)
    else:
        tile = _round_up(_cdiv(rows_needed, nt), LANE)
        nt = _cdiv(rows_needed, tile)

    gamma_p = _pad_vec(params['bn_g'], Cout_p)
    beta_p = _pad_vec(params['bn_b'], Cout_p)
    # NOTE: conv biases (conv1_b / conv2_b / ds_b) are intentionally NOT added:
    # every conv output feeds a training-mode BatchNorm, where a per-channel
    # constant cancels exactly in (x - batch_mean), so the output is unchanged.

    if downsample:
        Cin_p = _round_up(4 * Cin, LANE)
        xs = _prep_x_s4(x_ncl, tile, nt, Cin_p, compute_dtype)
        wcat1 = _prep_w_ds_fused(params['conv1_w'], params['ds_w'],
                                 Cin_p, Cout_p, compute_dtype)
        K1, n_seg1, seg_shift1 = 2, 2, (1, 0)
        y_rows1 = [nt * tile + 8, nt * tile]     # y1 (+8 halo rows), y_ds
    else:
        Cin_p = _round_up(Cin, LANE)
        xs = _prep_x_s1(x_ncl, tile, nt, Cin_p, compute_dtype)
        wcat1 = _prep_w_taps(params['conv1_w'], Cin_p, Cout_p, compute_dtype)
        K1, n_seg1, seg_shift1 = 3, 1, (1,)
        y_rows1 = [nt * tile + 8]

    # conv1 (+ fused 1x1 downsample conv on the same slab) + packed BN stats.
    outs1 = _conv_pallas(xs, wcat1, K=K1, n_seg=n_seg1, cpseg=Cout_p, tile=tile,
                         nt=nt, l_out=L_out, seg_shift=seg_shift1, prologue=None,
                         out_dtype=compute_dtype, y_rows=y_rows1)
    if downsample:
        y1, yds, stats1 = outs1
    else:
        y1, stats1 = outs1
        yds = None

    s1 = jnp.sum(stats1[:, :, 0, :Cout_p], axis=(0, 1))
    q1 = jnp.sum(stats1[:, :, 1, :Cout_p], axis=(0, 1))
    scale1, shift1 = _bn_fold(s1, q1, count, gamma_p, beta_p)

    # conv2 with fused "BN1-apply + ReLU" prologue + packed BN2 partial stats.
    # (NOTE: BN1 stats come from the f32 accumulator while conv2 reads the
    # compute-dtype-rounded y1 — a tiny documented inconsistency on bf16.)
    wcat2 = _prep_w_taps(params['conv2_w'], Cout_p, Cout_p, compute_dtype)
    y2, stats2 = _conv_pallas(y1, wcat2, K=3, n_seg=1, cpseg=Cout_p, tile=tile,
                              nt=nt, l_out=L_out, seg_shift=(0,),
                              prologue=(scale1, shift1), in_shift=1, l_in=L_out,
                              out_dtype=compute_dtype, y_rows=[nt * tile])
    s2 = jnp.sum(stats2[:, :, 0, :], axis=(0, 1))
    q2 = jnp.sum(stats2[:, :, 1, :], axis=(0, 1))
    scale2, shift2 = _bn_fold(s2, q2, count, gamma_p, beta_p)

    if downsample:
        sd = jnp.sum(stats1[:, :, 0, Cout_p:], axis=(0, 1))
        qd = jnp.sum(stats1[:, :, 1, Cout_p:], axis=(0, 1))
        gd = _pad_vec(params['ds_bn_g'], Cout_p)
        bd = _pad_vec(params['ds_bn_b'], Cout_p)
        scaled, shiftd = _bn_fold(sd, qd, count, gd, bd)
        out = _bn_add_relu_pallas(y2, scale2, shift2, yds, scaled, shiftd,
                                  tile=tile, nt=nt)
    else:
        # in_channel == out_channel: the reference module never adds the residual
        out = _bn_add_relu_pallas(y2, scale2, shift2, tile=tile, nt=nt)

    out = out[:, :L_out, :Cout]
    return jnp.transpose(out, (0, 2, 1))                 # NLC -> NCL


# --------------------------------------------------------------------------
# Plain-JAX reference (PyTorch semantics)
# --------------------------------------------------------------------------
def _conv1d_ref(x_ncl, w, b, stride, pad):
    out = jax.lax.conv_general_dilated(
        x_ncl, w, window_strides=(stride,), padding=[(pad, pad)],
        dimension_numbers=('NCH', 'OIH', 'NCH'),
        precision=jax.lax.Precision.HIGHEST)
    return out + b[None, :, None]


def _bn_ref(x_ncl, g, b):
    mean = jnp.mean(x_ncl, axis=(0, 2), keepdims=True)
    var = jnp.mean((x_ncl - mean) ** 2, axis=(0, 2), keepdims=True)
    return (x_ncl - mean) * jax.lax.rsqrt(var + EPS) * g[None, :, None] + b[None, :, None]


def basic_block_forward_ref(params, x):
    k1 = params['conv1_w'].shape[2]
    s1, p1 = (4, 2) if k1 == 5 else (1, 1)
    out = _conv1d_ref(x, params['conv1_w'], params['conv1_b'], s1, p1)
    out = jnp.maximum(_bn_ref(out, params['bn_g'], params['bn_b']), 0.0)
    out = _conv1d_ref(out, params['conv2_w'], params['conv2_b'], 1, 1)
    out = _bn_ref(out, params['bn_g'], params['bn_b'])
    if 'ds_w' in params:
        res = _bn_ref(_conv1d_ref(x, params['ds_w'], params['ds_b'], 4, 0),
                      params['ds_bn_g'], params['ds_bn_b'])
        out = out + res
    return jnp.maximum(out, 0.0)


# --------------------------------------------------------------------------
if __name__ == "__main__":
    key = jax.random.PRNGKey(0)
    kx, kp1, kp2 = jax.random.split(key, 3)
    x = jax.random.normal(kx, (2, 4, 16), jnp.float32)   # (N, C_in, L)

    params_a = init_basic_block(kp1, 4, 8)   # downsample path (k5 s4 p2 + 1x1 s4 branch)
    params_b = init_basic_block(kp2, 4, 4)   # same-channel path (k3 s1 p1, no residual add)

    ref_a = basic_block_forward_ref(params_a, x)
    ref_b = basic_block_forward_ref(params_b, x)

    # Exact-semantics path (f32 matmul inputs)
    fwd_f32 = jax.jit(functools.partial(basic_block_forward_pallas,
                                        compute_dtype=jnp.float32))
    out_a = jax.block_until_ready(fwd_f32(params_a, x))
    out_b = jax.block_until_ready(fwd_f32(params_b, x))
    assert out_a.shape == (2, 8, 4), out_a.shape
    assert out_b.shape == (2, 4, 16), out_b.shape
    assert float(jnp.max(jnp.abs(out_a - ref_a))) < 5e-3
    assert float(jnp.max(jnp.abs(out_b - ref_b))) < 5e-3

    # Fast path: bf16 MXU inputs, f32 accumulation / BN math
    fwd_bf16 = jax.jit(functools.partial(basic_block_forward_pallas,
                                         compute_dtype=jnp.bfloat16))
    out_a16 = jax.block_until_ready(fwd_bf16(params_a, x))
    out_b16 = jax.block_until_ready(fwd_bf16(params_b, x))
    assert float(jnp.max(jnp.abs(out_a16 - ref_a))) < 1e-1
    assert float(jnp.max(jnp.abs(out_b16 - ref_b))) < 1e-1

    print("KERNEL_OK")
</pallas_src>

<mosaic_0001>
module attributes {stable_mosaic.version = 11 : i64} {
  func.func @_conv_kernel(%arg0: i32, %arg1: i32, %arg2: memref<1x8x128xf32, #tpu.memory_space<vmem>>, %arg3: memref<1x8x128xf32, #tpu.memory_space<vmem>>, %arg4: memref<256x256xf32, #tpu.memory_space<vmem>>, %arg5: memref<1x8x128xf32, #tpu.memory_space<vmem>>, %arg6: memref<1x8x128xf32, #tpu.memory_space<vmem>>, %arg7: memref<1x1x8x256xf32, #tpu.memory_space<vmem>>) attributes {dimension_semantics = [#tpu.dimension_semantics<parallel>, #tpu.dimension_semantics<parallel>], iteration_bounds = array<i64: 2, 1>, scalar_prefetch = 0 : i64, scratch_operands = 0 : i64, tpu.core_type = #tpu.core_type<tc>, window_params = [{transform_indices = @transform_0, window_bounds = array<i64: 1, 8, 128>}, {transform_indices = @transform_1, window_bounds = array<i64: 1, 8, 128>}, {pipeline_mode = #tpu.pipeline_mode<synchronous>, transform_indices = @transform_2, window_bounds = array<i64: 256, 256>}, {transform_indices = @transform_3, window_bounds = array<i64: 1, 8, 128>}, {transform_indices = @transform_4, window_bounds = array<i64: 1, 8, 128>}, {transform_indices = @transform_5, window_bounds = array<i64: 1, 1, 8, 256>}]} {
    %c0 = arith.constant 0 : index
    %c0_0 = arith.constant 0 : index
    %c0_1 = arith.constant 0 : index
    %0 = vector.load %arg2[%c0, %c0_0, %c0_1] : memref<1x8x128xf32, #tpu.memory_space<vmem>>, vector<1x8x128xf32>
    %1 = vector.shape_cast %0 : vector<1x8x128xf32> to vector<8x128xf32>
    %c0_2 = arith.constant 0 : index
    %c0_3 = arith.constant 0 : index
    %c0_4 = arith.constant 0 : index
    %2 = vector.load %arg3[%c0_2, %c0_3, %c0_4] : memref<1x8x128xf32, #tpu.memory_space<vmem>>, vector<1x8x128xf32>
    %3 = vector.shape_cast %2 : vector<1x8x128xf32> to vector<8x128xf32>
    %4 = tpu.concatenate %1, %3 in 0 : vector<8x128xf32>, vector<8x128xf32> -> vector<16x128xf32>
    %5 = vector.extract_strided_slice %4 {offsets = [0, 0], sizes = [8, 128], strides = [1, 1]} : vector<16x128xf32> to vector<8x128xf32>
    %6 = vector.extract_strided_slice %4 {offsets = [1, 0], sizes = [8, 128], strides = [1, 1]} : vector<16x128xf32> to vector<8x128xf32>
    %7 = tpu.concatenate %5, %6 in 1 : vector<8x128xf32>, vector<8x128xf32> -> vector<8x256xf32>
    %c0_5 = arith.constant 0 : index
    %c0_6 = arith.constant 0 : index
    %8 = vector.load %arg4[%c0_5, %c0_6] : memref<256x256xf32, #tpu.memory_space<vmem>>, vector<256x256xf32>
    %cst = arith.constant dense<0.000000e+00> : vector<8x256xf32>
    %9 = tpu.matmul %7, %8, %cst {dimension_numbers = #tpu.dot_dimension_numbers<[1], [0], [0], [1], [0, 0, 1, 1], [], []>} : vector<8x256xf32>, vector<256x256xf32>, vector<8x256xf32> -> vector<8x256xf32>
    %10 = vector.extract_strided_slice %9 {offsets = [0, 0], sizes = [8, 128], strides = [1, 1]} : vector<8x256xf32> to vector<8x128xf32>
    %c0_7 = arith.constant 0 : index
    %c0_8 = arith.constant 0 : index
    %c0_9 = arith.constant 0 : index
    %11 = vector.load %arg5[%c0_7, %c0_8, %c0_9] : memref<1x8x128xf32, #tpu.memory_space<vmem>>, vector<1x8x128xf32>
    %12 = vector.shape_cast %11 : vector<1x8x128xf32> to vector<8x128xf32>
    %13 = vector.shape_cast %10 : vector<8x128xf32> to vector<1x8x128xf32>
    tpu.vector_store %arg5[%c0_7, %c0_8, %c0_9], %13 {strides = array<i32>} : memref<1x8x128xf32, #tpu.memory_space<vmem>>, vector<1x8x128xf32>,
    %14 = vector.extract_strided_slice %9 {offsets = [0, 128], sizes = [8, 128], strides = [1, 1]} : vector<8x256xf32> to vector<8x128xf32>
    %c0_10 = arith.constant 0 : index
    %c0_11 = arith.constant 0 : index
    %c0_12 = arith.constant 0 : index
    %15 = vector.load %arg6[%c0_10, %c0_11, %c0_12] : memref<1x8x128xf32, #tpu.memory_space<vmem>>, vector<1x8x128xf32>
    %16 = vector.shape_cast %15 : vector<1x8x128xf32> to vector<8x128xf32>
    %17 = vector.shape_cast %14 : vector<8x128xf32> to vector<1x8x128xf32>
    tpu.vector_store %arg6[%c0_10, %c0_11, %c0_12], %17 {strides = array<i32>} : memref<1x8x128xf32, #tpu.memory_space<vmem>>, vector<1x8x128xf32>,
    %18 = tpu.iota {dimensions = array<i32: 0>} : vector<8x256xi32>
    %c8_i32 = arith.constant 8 : i32
    %19 = arith.muli %arg1, %c8_i32 : i32
    %20 = vector.broadcast %19 : i32 to vector<8x256xi32>
    %21 = arith.addi %18, %20 : vector<8x256xi32>
    %22 = tpu.iota {dimensions = array<i32: 1>} : vector<8x256xi32>
    %c128_i32 = arith.constant 128 : i32
    %23 = vector.broadcast %c128_i32 : i32 to vector<8x256xi32>
    %24 = arith.cmpi slt, %22, %23 : vector<8x256xi32>
    %c1_i32 = arith.constant 1 : i32
    %c0_i32 = arith.constant 0 : i32
    %25 = vector.broadcast %c1_i32 : i32 to vector<8x256xi32>
    %26 = vector.broadcast %c0_i32 : i32 to vector<8x256xi32>
    %27 = arith.select %24, %25, %26 : vector<8x256xi1>, vector<8x256xi32>
    %28 = arith.cmpi sge, %21, %27 : vector<8x256xi32>
    %c4_i32 = arith.constant 4 : i32
    %29 = vector.broadcast %c4_i32 : i32 to vector<8x256xi32>
    %30 = arith.addi %27, %29 : vector<8x256xi32>
    %31 = arith.cmpi slt, %21, %30 : vector<8x256xi32>
    %32 = arith.andi %28, %31 : vector<8x256xi1>
    %cst_13 = arith.constant 0.000000e+00 : f32
    %33 = vector.broadcast %cst_13 : f32 to vector<8x256xf32>
    %34 = arith.select %32, %9, %33 : vector<8x256xi1>, vector<8x256xf32>
    %cst_14 = arith.constant dense<0.000000e+00> : vector<256xf32>
    %35 = vector.multi_reduction <add>, %34, %cst_14 [0] : vector<8x256xf32> to vector<256xf32>
    %36 = vector.shape_cast %35 : vector<256xf32> to vector<1x256xf32>
    %37 = arith.mulf %34, %34 : vector<8x256xf32>
    %cst_15 = arith.constant dense<0.000000e+00> : vector<256xf32>
    %38 = vector.multi_reduction <add>, %37, %cst_15 [0] : vector<8x256xf32> to vector<256xf32>
    %39 = vector.shape_cast %38 : vector<256xf32> to vector<1x256xf32>
    %40 = tpu.iota {dimensions = array<i32: 0>} : vector<8x256xi32>
    %c0_i32_16 = arith.constant 0 : i32
    %41 = vector.broadcast %c0_i32_16 : i32 to vector<8x256xi32>
    %42 = arith.cmpi eq, %40, %41 : vector<8x256xi32>
    %cst_17 = arith.constant 0.000000e+00 : f32
    %43 = vector.shape_cast %36 : vector<1x256xf32> to vector<1x256xf32>
    %44 = vector.broadcast %43 : vector<1x256xf32> to vector<8x256xf32>
    %45 = vector.broadcast %cst_17 : f32 to vector<8x256xf32>
    %46 = arith.select %42, %44, %45 : vector<8x256xi1>, vector<8x256xf32>
    %c1_i32_18 = arith.constant 1 : i32
    %47 = vector.broadcast %c1_i32_18 : i32 to vector<8x256xi32>
    %48 = arith.cmpi eq, %40, %47 : vector<8x256xi32>
    %cst_19 = arith.constant 0.000000e+00 : f32
    %49 = vector.shape_cast %39 : vector<1x256xf32> to vector<1x256xf32>
    %50 = vector.broadcast %49 : vector<1x256xf32> to vector<8x256xf32>
    %51 = vector.broadcast %cst_19 : f32 to vector<8x256xf32>
    %52 = arith.select %48, %50, %51 : vector<8x256xi1>, vector<8x256xf32>
    %53 = arith.addf %46, %52 : vector<8x256xf32>
    %54 = vector.shape_cast %53 : vector<8x256xf32> to vector<1x1x8x256xf32>
    %c0_20 = arith.constant 0 : index
    %c0_21 = arith.constant 0 : index
    %c0_22 = arith.constant 0 : index
    %c0_23 = arith.constant 0 : index
    %55 = vector.load %arg7[%c0_20, %c0_21, %c0_22, %c0_23] : memref<1x1x8x256xf32, #tpu.memory_space<vmem>>, vector<1x1x8x256xf32>
    tpu.vector_store %arg7[%c0_20, %c0_21, %c0_22, %c0_23], %54 {strides = array<i32>} : memref<1x1x8x256xf32, #tpu.memory_space<vmem>>, vector<1x1x8x256xf32>,
    return
  }
  func.func @transform_0(%arg0: i32, %arg1: i32) -> (i32, i32, i32) {
    %c0_i32 = arith.constant 0 : i32
    %c0_i32_0 = arith.constant 0 : i32
    return %arg0, %arg1, %c0_i32 : i32, i32, i32
  }
  func.func @transform_1(%arg0: i32, %arg1: i32) -> (i32, i32, i32) {
    %c1_i32 = arith.constant 1 : i32
    %0 = arith.addi %arg1, %c1_i32 : i32
    %c1_i32_0 = arith.constant 1 : i32
    %1 = arith.muli %0, %c1_i32_0 : i32
    %c0_i32 = arith.constant 0 : i32
    %c0_i32_1 = arith.constant 0 : i32
    return %arg0, %1, %c0_i32 : i32, i32, i32
  }
  func.func @transform_2(%arg0: i32, %arg1: i32) -> (i32, i32) {
    %c0_i32 = arith.constant 0 : i32
    %c0_i32_0 = arith.constant 0 : i32
    %c0_i32_1 = arith.constant 0 : i32
    return %c0_i32, %c0_i32_0 : i32, i32
  }
  func.func @transform_3(%arg0: i32, %arg1: i32) -> (i32, i32, i32) {
    %c0_i32 = arith.constant 0 : i32
    %c0_i32_0 = arith.constant 0 : i32
    return %arg0, %arg1, %c0_i32 : i32, i32, i32
  }
  func.func @transform_4(%arg0: i32, %arg1: i32) -> (i32, i32, i32) {
    %c0_i32 = arith.constant 0 : i32
    %c0_i32_0 = arith.constant 0 : i32
    return %arg0, %arg1, %c0_i32 : i32, i32, i32
  }
  func.func @transform_5(%arg0: i32, %arg1: i32) -> (i32, i32, i32, i32) {
    %c0_i32 = arith.constant 0 : i32
    %c0_i32_0 = arith.constant 0 : i32
    %c0_i32_1 = arith.constant 0 : i32
    return %arg0, %arg1, %c0_i32, %c0_i32_0 : i32, i32, i32, i32
  }
}

module attributes {stable_mosaic.version = 11 : i64} {
  func.func @_conv_kernel(%arg0: i32, %arg1: i32, %arg2: memref<1x8x128xf32, #tpu.memory_space<vmem>>, %arg3: memref<1x8x128xf32, #tpu.memory_space<vmem>>, %arg4: memref<384x128xf32, #tpu.memory_space<vmem>>, %arg5: memref<1x128xf32, #tpu.memory_space<vmem>>, %arg6: memref<1x128xf32, #tpu.memory_space<vmem>>, %arg7: memref<1x8x128xf32, #tpu.memory_space<vmem>>, %arg8: memref<1x1x8x128xf32, #tpu.memory_space<vmem>>) attributes {dimension_semantics = [#tpu.dimension_semantics<parallel>, #tpu.dimension_semantics<parallel>], iteration_bounds = array<i64: 2, 1>, scalar_prefetch = 0 : i64, scratch_operands = 0 : i64, tpu.core_type = #tpu.core_type<tc>, window_params = [{transform_indices = @transform_0, window_bounds = array<i64: 1, 8, 128>}, {transform_indices = @transform_1, window_bounds = array<i64: 1, 8, 128>}, {pipeline_mode = #tpu.pipeline_mode<synchronous>, transform_indices = @transform_2, window_bounds = array<i64: 384, 128>}, {pipeline_mode = #tpu.pipeline_mode<synchronous>, transform_indices = @transform_3, window_bounds = array<i64: 1, 128>}, {pipeline_mode = #tpu.pipeline_mode<synchronous>, transform_indices = @transform_4, window_bounds = array<i64: 1, 128>}, {transform_indices = @transform_5, window_bounds = array<i64: 1, 8, 128>}, {transform_indices = @transform_6, window_bounds = array<i64: 1, 1, 8, 128>}]} {
    %c0 = arith.constant 0 : index
    %c0_0 = arith.constant 0 : index
    %c0_1 = arith.constant 0 : index
    %0 = vector.load %arg2[%c0, %c0_0, %c0_1] : memref<1x8x128xf32, #tpu.memory_space<vmem>>, vector<1x8x128xf32>
    %1 = vector.shape_cast %0 : vector<1x8x128xf32> to vector<8x128xf32>
    %c0_2 = arith.constant 0 : index
    %c0_3 = arith.constant 0 : index
    %c0_4 = arith.constant 0 : index
    %2 = vector.load %arg3[%c0_2, %c0_3, %c0_4] : memref<1x8x128xf32, #tpu.memory_space<vmem>>, vector<1x8x128xf32>
    %3 = vector.shape_cast %2 : vector<1x8x128xf32> to vector<8x128xf32>
    %4 = tpu.concatenate %1, %3 in 0 : vector<8x128xf32>, vector<8x128xf32> -> vector<16x128xf32>
    %5 = tpu.iota {dimensions = array<i32: 0>} : vector<16x128xi32>
    %c8_i32 = arith.constant 8 : i32
    %6 = arith.muli %arg1, %c8_i32 : i32
    %7 = vector.broadcast %6 : i32 to vector<16x128xi32>
    %8 = arith.addi %5, %7 : vector<16x128xi32>
    %c1_i32 = arith.constant 1 : i32
    %9 = vector.broadcast %c1_i32 : i32 to vector<16x128xi32>
    %10 = arith.cmpi sge, %8, %9 : vector<16x128xi32>
    %c5_i32 = arith.constant 5 : i32
    %11 = vector.broadcast %c5_i32 : i32 to vector<16x128xi32>
    %12 = arith.cmpi slt, %8, %11 : vector<16x128xi32>
    %13 = arith.andi %10, %12 : vector<16x128xi1>
    %cst = arith.constant 0.000000e+00 : f32
    %14 = vector.broadcast %cst : f32 to vector<16x128xf32>
    %15 = arith.select %13, %4, %14 : vector<16x128xi1>, vector<16x128xf32>
    %c0_5 = arith.constant 0 : index
    %c0_6 = arith.constant 0 : index
    %16 = vector.load %arg5[%c0_5, %c0_6] : memref<1x128xf32, #tpu.memory_space<vmem>>, vector<1x128xf32>
    %17 = vector.broadcast %16 : vector<1x128xf32> to vector<16x128xf32>
    %18 = arith.mulf %15, %17 : vector<16x128xf32>
    %c0_7 = arith.constant 0 : index
    %c0_8 = arith.constant 0 : index
    %19 = vector.load %arg6[%c0_7, %c0_8] : memref<1x128xf32, #tpu.memory_space<vmem>>, vector<1x128xf32>
    %20 = vector.broadcast %19 : vector<1x128xf32> to vector<16x128xf32>
    %21 = arith.addf %18, %20 : vector<16x128xf32>
    %cst_9 = arith.constant 0.000000e+00 : f32
    %22 = vector.broadcast %cst_9 : f32 to vector<16x128xf32>
    %23 = arith.maximumf %21, %22 : vector<16x128xf32>
    %cst_10 = arith.constant 0.000000e+00 : f32
    %24 = vector.broadcast %cst_10 : f32 to vector<16x128xf32>
    %25 = arith.select %13, %23, %24 : vector<16x128xi1>, vector<16x128xf32>
    %26 = vector.extract_strided_slice %25 {offsets = [0, 0], sizes = [8, 128], strides = [1, 1]} : vector<16x128xf32> to vector<8x128xf32>
    %27 = vector.extract_strided_slice %25 {offsets = [1, 0], sizes = [8, 128], strides = [1, 1]} : vector<16x128xf32> to vector<8x128xf32>
    %28 = vector.extract_strided_slice %25 {offsets = [2, 0], sizes = [8, 128], strides = [1, 1]} : vector<16x128xf32> to vector<8x128xf32>
    %29 = tpu.concatenate %26, %27, %28 in 1 : vector<8x128xf32>, vector<8x128xf32>, vector<8x128xf32> -> vector<8x384xf32>
    %c0_11 = arith.constant 0 : index
    %c0_12 = arith.constant 0 : index
    %30 = vector.load %arg4[%c0_11, %c0_12] : memref<384x128xf32, #tpu.memory_space<vmem>>, vector<384x128xf32>
    %cst_13 = arith.constant dense<0.000000e+00> : vector<8x128xf32>
    %31 = tpu.matmul %29, %30, %cst_13 {dimension_numbers = #tpu.dot_dimension_numbers<[1], [0], [0], [1], [0, 0, 1, 1], [], []>} : vector<8x384xf32>, vector<384x128xf32>, vector<8x128xf32> -> vector<8x128xf32>
    %c0_14 = arith.constant 0 : index
    %c0_15 = arith.constant 0 : index
    %c0_16 = arith.constant 0 : index
    %32 = vector.load %arg7[%c0_14, %c0_15, %c0_16] : memref<1x8x128xf32, #tpu.memory_space<vmem>>, vector<1x8x128xf32>
    %33 = vector.shape_cast %32 : vector<1x8x128xf32> to vector<8x128xf32>
    %34 = vector.shape_cast %31 : vector<8x128xf32> to vector<1x8x128xf32>
    tpu.vector_store %arg7[%c0_14, %c0_15, %c0_16], %34 {strides = array<i32>} : memref<1x8x128xf32, #tpu.memory_space<vmem>>, vector<1x8x128xf32>,
    %35 = tpu.iota {dimensions = array<i32: 0>} : vector<8x128xi32>
    %c8_i32_17 = arith.constant 8 : i32
    %36 = arith.muli %arg1, %c8_i32_17 : i32
    %37 = vector.broadcast %36 : i32 to vector<8x128xi32>
    %38 = arith.addi %35, %37 : vector<8x128xi32>
    %c0_i32 = arith.constant 0 : i32
    %39 = vector.broadcast %c0_i32 : i32 to vector<8x128xi32>
    %40 = arith.cmpi sge, %38, %39 : vector<8x128xi32>
    %c4_i32 = arith.constant 4 : i32
    %41 = vector.broadcast %c4_i32 : i32 to vector<8x128xi32>
    %42 = arith.cmpi slt, %38, %41 : vector<8x128xi32>
    %43 = arith.andi %40, %42 : vector<8x128xi1>
    %cst_18 = arith.constant 0.000000e+00 : f32
    %44 = vector.broadcast %cst_18 : f32 to vector<8x128xf32>
    %45 = arith.select %43, %31, %44 : vector<8x128xi1>, vector<8x128xf32>
    %cst_19 = arith.constant dense<0.000000e+00> : vector<128xf32>
    %46 = vector.multi_reduction <add>, %45, %cst_19 [0] : vector<8x128xf32> to vector<128xf32>
    %47 = vector.shape_cast %46 : vector<128xf32> to vector<1x128xf32>
    %48 = arith.mulf %45, %45 : vector<8x128xf32>
    %cst_20 = arith.constant dense<0.000000e+00> : vector<128xf32>
    %49 = vector.multi_reduction <add>, %48, %cst_20 [0] : vector<8x128xf32> to vector<128xf32>
    %50 = vector.shape_cast %49 : vector<128xf32> to vector<1x128xf32>
    %51 = tpu.iota {dimensions = array<i32: 0>} : vector<8x128xi32>
    %c0_i32_21 = arith.constant 0 : i32
    %52 = vector.broadcast %c0_i32_21 : i32 to vector<8x128xi32>
    %53 = arith.cmpi eq, %51, %52 : vector<8x128xi32>
    %cst_22 = arith.constant 0.000000e+00 : f32
    %54 = vector.shape_cast %47 : vector<1x128xf32> to vector<1x128xf32>
    %55 = vector.broadcast %54 : vector<1x128xf32> to vector<8x128xf32>
    %56 = vector.broadcast %cst_22 : f32 to vector<8x128xf32>
    %57 = arith.select %53, %55, %56 : vector<8x128xi1>, vector<8x128xf32>
    %c1_i32_23 = arith.constant 1 : i32
    %58 = vector.broadcast %c1_i32_23 : i32 to vector<8x128xi32>
    %59 = arith.cmpi eq, %51, %58 : vector<8x128xi32>
    %cst_24 = arith.constant 0.000000e+00 : f32
    %60 = vector.shape_cast %50 : vector<1x128xf32> to vector<1x128xf32>
    %61 = vector.broadcast %60 : vector<1x128xf32> to vector<8x128xf32>
    %62 = vector.broadcast %cst_24 : f32 to vector<8x128xf32>
    %63 = arith.select %59, %61, %62 : vector<8x128xi1>, vector<8x128xf32>
    %64 = arith.addf %57, %63 : vector<8x128xf32>
    %65 = vector.shape_cast %64 : vector<8x128xf32> to vector<1x1x8x128xf32>
    %c0_25 = arith.constant 0 : index
    %c0_26 = arith.constant 0 : index
    %c0_27 = arith.constant 0 : index
    %c0_28 = arith.constant 0 : index
    %66 = vector.load %arg8[%c0_25, %c0_26, %c0_27, %c0_28] : memref<1x1x8x128xf32, #tpu.memory_space<vmem>>, vector<1x1x8x128xf32>
    tpu.vector_store %arg8[%c0_25, %c0_26, %c0_27, %c0_28], %65 {strides = array<i32>} : memref<1x1x8x128xf32, #tpu.memory_space<vmem>>, vector<1x1x8x128xf32>,
    return
  }
  func.func @transform_0(%arg0: i32, %arg1: i32) -> (i32, i32, i32) {
    %c0_i32 = arith.constant 0 : i32
    %c0_i32_0 = arith.constant 0 : i32
    return %arg0, %arg1, %c0_i32 : i32, i32, i32
  }
  func.func @transform_1(%arg0: i32, %arg1: i32) -> (i32, i32, i32) {
    %c1_i32 = arith.constant 1 : i32
    %0 = arith.addi %arg1, %c1_i32 : i32
    %c1_i32_0 = arith.constant 1 : i32
    %1 = arith.muli %0, %c1_i32_0 : i32
    %c0_i32 = arith.constant 0 : i32
    %c0_i32_1 = arith.constant 0 : i32
    return %arg0, %1, %c0_i32 : i32, i32, i32
  }
  func.func @transform_2(%arg0: i32, %arg1: i32) -> (i32, i32) {
    %c0_i32 = arith.constant 0 : i32
    %c0_i32_0 = arith.constant 0 : i32
    %c0_i32_1 = arith.constant 0 : i32
    return %c0_i32, %c0_i32_0 : i32, i32
  }
  func.func @transform_3(%arg0: i32, %arg1: i32) -> (i32, i32) {
    %c0_i32 = arith.constant 0 : i32
    %c0_i32_0 = arith.constant 0 : i32
    %c0_i32_1 = arith.constant 0 : i32
    return %c0_i32, %c0_i32_0 : i32, i32
  }
  func.func @transform_4(%arg0: i32, %arg1: i32) -> (i32, i32) {
    %c0_i32 = arith.constant 0 : i32
    %c0_i32_0 = arith.constant 0 : i32
    %c0_i32_1 = arith.constant 0 : i32
    return %c0_i32, %c0_i32_0 : i32, i32
  }
  func.func @transform_5(%arg0: i32, %arg1: i32) -> (i32, i32, i32) {
    %c0_i32 = arith.constant 0 : i32
    %c0_i32_0 = arith.constant 0 : i32
    return %arg0, %arg1, %c0_i32 : i32, i32, i32
  }
  func.func @transform_6(%arg0: i32, %arg1: i32) -> (i32, i32, i32, i32) {
    %c0_i32 = arith.constant 0 : i32
    %c0_i32_0 = arith.constant 0 : i32
    %c0_i32_1 = arith.constant 0 : i32
    return %arg0, %arg1, %c0_i32, %c0_i32_0 : i32, i32, i32, i32
  }
}

module attributes {stable_mosaic.version = 11 : i64} {
  func.func @_bn_add_relu_kernel(%arg0: i32, %arg1: i32, %arg2: memref<1x8x128xf32, #tpu.memory_space<vmem>>, %arg3: memref<1x128xf32, #tpu.memory_space<vmem>>, %arg4: memref<1x128xf32, #tpu.memory_space<vmem>>, %arg5: memref<1x8x128xf32, #tpu.memory_space<vmem>>, %arg6: memref<1x128xf32, #tpu.memory_space<vmem>>, %arg7: memref<1x128xf32, #tpu.memory_space<vmem>>, %arg8: memref<1x8x128xf32, #tpu.memory_space<vmem>>) attributes {dimension_semantics = [#tpu.dimension_semantics<parallel>, #tpu.dimension_semantics<parallel>], iteration_bounds = array<i64: 2, 1>, scalar_prefetch = 0 : i64, scratch_operands = 0 : i64, tpu.core_type = #tpu.core_type<tc>, window_params = [{transform_indices = @transform_0, window_bounds = array<i64: 1, 8, 128>}, {pipeline_mode = #tpu.pipeline_mode<synchronous>, transform_indices = @transform_1, window_bounds = array<i64: 1, 128>}, {pipeline_mode = #tpu.pipeline_mode<synchronous>, transform_indices = @transform_2, window_bounds = array<i64: 1, 128>}, {transform_indices = @transform_3, window_bounds = array<i64: 1, 8, 128>}, {pipeline_mode = #tpu.pipeline_mode<synchronous>, transform_indices = @transform_4, window_bounds = array<i64: 1, 128>}, {pipeline_mode = #tpu.pipeline_mode<synchronous>, transform_indices = @transform_5, window_bounds = array<i64: 1, 128>}, {transform_indices = @transform_6, window_bounds = array<i64: 1, 8, 128>}]} {
    %c0 = arith.constant 0 : index
    %c0_0 = arith.constant 0 : index
    %c0_1 = arith.constant 0 : index
    %0 = vector.load %arg2[%c0, %c0_0, %c0_1] : memref<1x8x128xf32, #tpu.memory_space<vmem>>, vector<1x8x128xf32>
    %1 = vector.shape_cast %0 : vector<1x8x128xf32> to vector<8x128xf32>
    %c0_2 = arith.constant 0 : index
    %c0_3 = arith.constant 0 : index
    %2 = vector.load %arg3[%c0_2, %c0_3] : memref<1x128xf32, #tpu.memory_space<vmem>>, vector<1x128xf32>
    %3 = vector.broadcast %2 : vector<1x128xf32> to vector<8x128xf32>
    %4 = arith.mulf %1, %3 : vector<8x128xf32>
    %c0_4 = arith.constant 0 : index
    %c0_5 = arith.constant 0 : index
    %5 = vector.load %arg4[%c0_4, %c0_5] : memref<1x128xf32, #tpu.memory_space<vmem>>, vector<1x128xf32>
    %6 = vector.broadcast %5 : vector<1x128xf32> to vector<8x128xf32>
    %7 = arith.addf %4, %6 : vector<8x128xf32>
    %c0_6 = arith.constant 0 : index
    %c0_7 = arith.constant 0 : index
    %c0_8 = arith.constant 0 : index
    %8 = vector.load %arg5[%c0_6, %c0_7, %c0_8] : memref<1x8x128xf32, #tpu.memory_space<vmem>>, vector<1x8x128xf32>
    %9 = vector.shape_cast %8 : vector<1x8x128xf32> to vector<8x128xf32>
    %c0_9 = arith.constant 0 : index
    %c0_10 = arith.constant 0 : index
    %10 = vector.load %arg6[%c0_9, %c0_10] : memref<1x128xf32, #tpu.memory_space<vmem>>, vector<1x128xf32>
    %11 = vector.broadcast %10 : vector<1x128xf32> to vector<8x128xf32>
    %12 = arith.mulf %9, %11 : vector<8x128xf32>
    %13 = arith.addf %7, %12 : vector<8x128xf32>
    %c0_11 = arith.constant 0 : index
    %c0_12 = arith.constant 0 : index
    %14 = vector.load %arg7[%c0_11, %c0_12] : memref<1x128xf32, #tpu.memory_space<vmem>>, vector<1x128xf32>
    %15 = vector.broadcast %14 : vector<1x128xf32> to vector<8x128xf32>
    %16 = arith.addf %13, %15 : vector<8x128xf32>
    %cst = arith.constant 0.000000e+00 : f32
    %17 = vector.broadcast %cst : f32 to vector<8x128xf32>
    %18 = arith.maximumf %16, %17 : vector<8x128xf32>
    %c0_13 = arith.constant 0 : index
    %c0_14 = arith.constant 0 : index
    %c0_15 = arith.constant 0 : index
    %19 = vector.load %arg8[%c0_13, %c0_14, %c0_15] : memref<1x8x128xf32, #tpu.memory_space<vmem>>, vector<1x8x128xf32>
    %20 = vector.shape_cast %19 : vector<1x8x128xf32> to vector<8x128xf32>
    %21 = vector.shape_cast %18 : vector<8x128xf32> to vector<1x8x128xf32>
    tpu.vector_store %arg8[%c0_13, %c0_14, %c0_15], %21 {strides = array<i32>} : memref<1x8x128xf32, #tpu.memory_space<vmem>>, vector<1x8x128xf32>,
    return
  }
  func.func @transform_0(%arg0: i32, %arg1: i32) -> (i32, i32, i32) {
    %c0_i32 = arith.constant 0 : i32
    %c0_i32_0 = arith.constant 0 : i32
    return %arg0, %arg1, %c0_i32 : i32, i32, i32
  }
  func.func @transform_1(%arg0: i32, %arg1: i32) -> (i32, i32) {
    %c0_i32 = arith.constant 0 : i32
    %c0_i32_0 = arith.constant 0 : i32
    %c0_i32_1 = arith.constant 0 : i32
    return %c0_i32, %c0_i32_0 : i32, i32
  }
  func.func @transform_2(%arg0: i32, %arg1: i32) -> (i32, i32) {
    %c0_i32 = arith.constant 0 : i32
    %c0_i32_0 = arith.constant 0 : i32
    %c0_i32_1 = arith.constant 0 : i32
    return %c0_i32, %c0_i32_0 : i32, i32
  }
  func.func @transform_3(%arg0: i32, %arg1: i32) -> (i32, i32, i32) {
    %c0_i32 = arith.constant 0 : i32
    %c0_i32_0 = arith.constant 0 : i32
    return %arg0, %arg1, %c0_i32 : i32, i32, i32
  }
  func.func @transform_4(%arg0: i32, %arg1: i32) -> (i32, i32) {
    %c0_i32 = arith.constant 0 : i32
    %c0_i32_0 = arith.constant 0 : i32
    %c0_i32_1 = arith.constant 0 : i32
    return %c0_i32, %c0_i32_0 : i32, i32
  }
  func.func @transform_5(%arg0: i32, %arg1: i32) -> (i32, i32) {
    %c0_i32 = arith.constant 0 : i32
    %c0_i32_0 = arith.constant 0 : i32
    %c0_i32_1 = arith.constant 0 : i32
    return %c0_i32, %c0_i32_0 : i32, i32
  }
  func.func @transform_6(%arg0: i32, %arg1: i32) -> (i32, i32, i32) {
    %c0_i32 = arith.constant 0 : i32
    %c0_i32_0 = arith.constant 0 : i32
    return %arg0, %arg1, %c0_i32 : i32, i32, i32
  }
}

</mosaic_0001>

<llo_original>
// kernel: basic_block_forward_pallas.5
$region0: #{basic_block_forward_pallas.5}
  #allocation0 [shape = 'u32[]', space=smem, size = 0x4, offset = 0x4, fixed_abs, tag = 'smem constant byte address 0x4 - core index']
  #allocation1 [shape = 'u32[144,128]{1,0:T(1,128)}', space=vmem, size = 0x12000, scoped, tag = 'internal scratch']
  %s0 = inlined_call_operand.vmem [shape: f32[2,8,128], index: 0, kind: input, shape index: {}]
  %s1 = inlined_call_operand.vmem [shape: f32[1,128], index: 1, kind: input, shape index: {}]
  %s2 = inlined_call_operand.vmem [shape: f32[1,128], index: 2, kind: input, shape index: {}]
  %s3 = inlined_call_operand.vmem [shape: f32[2,8,128], index: 3, kind: input, shape index: {}]
  %s4 = inlined_call_operand.vmem [shape: f32[1,128], index: 4, kind: input, shape index: {}]
  %s5 = inlined_call_operand.vmem [shape: f32[1,128], index: 5, kind: input, shape index: {}]
  %s6 = inlined_call_operand.vmem [shape: f32[2,8,128], index: 6, kind: output, shape index: {}]
  %s7 = sld [smem:[#allocation0]]
  $region57: #{basic_block_forward_pallas.5} parent=0
    _
  %s9 = ssub.s32 1, %s7
  %s10 = scalar_select 0, %s9, %s7
  loop: start=0, step=1, limit=4
  $region2: #{basic_block_forward_pallas.5} parent=0 // loop_pre_header
    _
  $region3: #{basic_block_forward_pallas.5} parent=0 // loop_header
    %s12 = sphi 0, %s16
    %p13 = scmp.ge.s32.totalorder %s12, 4
    %s19 = sphi 0, %s31
    %s20 = sphi 0, %s27
    %s21 = sphi 0, %s19
    %s22 = sphi 0, %s20
    %s23 = sphi 0, %s21
    %s24 = sphi 0, %s22
    %s36 = sphi 0, %s38
    %s39 = sphi 0, %s36
    %s40 = sphi 0, %s39
    %s56 = sphi 0, %s40
    %s60 = sphi 0, %s60
    %s62 = sphi 0, %s60
    %s63 = sphi 0, %s62
    %s77 = sphi 0, %s63
    %s81 = sphi 0, %s81
    %s83 = sphi 0, %s81
    %s84 = sphi 0, %s83
    %s98 = sphi 0, %s84
    %s106 = sphi 0, %s108
    %s109 = sphi 0, %s106
    %s110 = sphi 0, %s109
    %s126 = sphi 0, %s110
    %s130 = sphi 0, %s130
    %s132 = sphi 0, %s130
    %s133 = sphi 0, %s132
    %s147 = sphi 0, %s133
    %s151 = sphi 0, %s151
    %s153 = sphi 0, %s151
    %s154 = sphi 0, %s153
    %s168 = sphi 0, %s154
    %s176 = sphi 0, %s178
    %s179 = sphi 0, %s176
    %s180 = sphi 0, %s179
    %s196 = sphi 0, %s180
  $region4: #{basic_block_forward_pallas.5} parent=0 // loop_header_branch
    %15 = sbr.rel (%p13) target = $region8
  $region5: #{basic_block_forward_pallas.5} parent=0 // loop_body
    %s17 = ssub.s32 %s12, 1
    %s18 = ssub.s32 %s12, 2
    %s25 = sadd.s32 1, %s20
    %p26 = scmp.ge.s32.totalorder %s25, 1
    %s27 = scalar_select %p26, 0, %s25
    %s28 = sadd.s32 1, %s19
    %s29 = scalar_select %p26, %s28, %s19
    %p30 = scmp.ge.s32.totalorder %s29, 2
    %s31 = scalar_select %p30, 0, %s29
    %s32 = ssub.s32 %s19, %s31
    %s33 = ssub.s32 %s20, %s27
    %s34 = sor.u32 %s32, %s33
    %p35 = scmp.eq.s32.totalorder %s34, 0
    %s37 = sadd.s32 %s36, 1
    %s38 = scalar_select %p35, %s36, %s37
    %p41 = pneg %p35
    %p42 = scmp.eq.s32.totalorder %s12, 1
    %p43 = por %p41, %p42
    %p44 = scmp.ne.s32.totalorder %s36, %s39
    %p45 = scmp.eq.s32.totalorder %s12, 0
    %p46 = por %p44, %p45
    %p47 = scmp.ne.s32.totalorder %s36, %s39
    %p48 = scmp.eq.s32.totalorder %s17, 1
    %p49 = por %p47, %p48
    %p50 = scmp.ne.s32.totalorder %s39, %s40
    %p51 = scmp.eq.s32.totalorder %s17, 0
    %p52 = por %p50, %p51
    %p53 = scmp.ne.s32.totalorder %s39, %s40
    %p54 = scmp.eq.s32.totalorder %s18, 1
    %p55 = por %p53, %p54
    %p57 = scmp.ne.s32.totalorder %s40, %s56
    %p58 = scmp.eq.s32.totalorder %s18, 0
    %p59 = por %p57, %p58
    %s61 = sadd.s32 %s60, 1
    %p64 = scmp.eq.s32.totalorder %s12, 1
    %p65 = scmp.ne.s32.totalorder %s60, %s62
    %p66 = scmp.eq.s32.totalorder %s12, 0
    %p67 = por %p65, %p66
    %p68 = scmp.ne.s32.totalorder %s60, %s62
    %p69 = scmp.eq.s32.totalorder %s17, 1
    %p70 = por %p68, %p69
    %p71 = scmp.ne.s32.totalorder %s62, %s63
    %p72 = scmp.eq.s32.totalorder %s17, 0
    %p73 = por %p71, %p72
    %p74 = scmp.ne.s32.totalorder %s62, %s63
    %p75 = scmp.eq.s32.totalorder %s18, 1
    %p76 = por %p74, %p75
    %p78 = scmp.ne.s32.totalorder %s63, %s77
    %p79 = scmp.eq.s32.totalorder %s18, 0
    %p80 = por %p78, %p79
    %s82 = sadd.s32 %s81, 1
    %p85 = scmp.eq.s32.totalorder %s12, 1
    %p86 = scmp.ne.s32.totalorder %s81, %s83
    %p87 = scmp.eq.s32.totalorder %s12, 0
    %p88 = por %p86, %p87
    %p89 = scmp.ne.s32.totalorder %s81, %s83
    %p90 = scmp.eq.s32.totalorder %s17, 1
    %p91 = por %p89, %p90
    %p92 = scmp.ne.s32.totalorder %s83, %s84
    %p93 = scmp.eq.s32.totalorder %s17, 0
    %p94 = por %p92, %p93
    %p95 = scmp.ne.s32.totalorder %s83, %s84
    %p96 = scmp.eq.s32.totalorder %s18, 1
    %p97 = por %p95, %p96
    %p99 = scmp.ne.s32.totalorder %s84, %s98
    %p100 = scmp.eq.s32.totalorder %s18, 0
    %p101 = por %p99, %p100
    %s102 = ssub.s32 %s19, %s31
    %s103 = ssub.s32 %s20, %s27
    %s104 = sor.u32 %s102, %s103
    %p105 = scmp.eq.s32.totalorder %s104, 0
    %s107 = sadd.s32 %s106, 1
    %s108 = scalar_select %p105, %s106, %s107
    %p111 = pneg %p105
    %p112 = scmp.eq.s32.totalorder %s12, 1
    %p113 = por %p111, %p112
    %p114 = scmp.ne.s32.totalorder %s106, %s109
    %p115 = scmp.eq.s32.totalorder %s12, 0
    %p116 = por %p114, %p115
    %p117 = scmp.ne.s32.totalorder %s106, %s109
    %p118 = scmp.eq.s32.totalorder %s17, 1
    %p119 = por %p117, %p118
    %p120 = scmp.ne.s32.totalorder %s109, %s110
    %p121 = scmp.eq.s32.totalorder %s17, 0
    %p122 = por %p120, %p121
    %p123 = scmp.ne.s32.totalorder %s109, %s110
    %p124 = scmp.eq.s32.totalorder %s18, 1
    %p125 = por %p123, %p124
    %p127 = scmp.ne.s32.totalorder %s110, %s126
    %p128 = scmp.eq.s32.totalorder %s18, 0
    %p129 = por %p127, %p128
    %s131 = sadd.s32 %s130, 1
    %p134 = scmp.eq.s32.totalorder %s12, 1
    %p135 = scmp.ne.s32.totalorder %s130, %s132
    %p136 = scmp.eq.s32.totalorder %s12, 0
    %p137 = por %p135, %p136
    %p138 = scmp.ne.s32.totalorder %s130, %s132
    %p139 = scmp.eq.s32.totalorder %s17, 1
    %p140 = por %p138, %p139
    %p141 = scmp.ne.s32.totalorder %s132, %s133
    %p142 = scmp.eq.s32.totalorder %s17, 0
    %p143 = por %p141, %p142
    %p144 = scmp.ne.s32.totalorder %s132, %s133
    %p145 = scmp.eq.s32.totalorder %s18, 1
    %p146 = por %p144, %p145
    %p148 = scmp.ne.s32.totalorder %s133, %s147
    %p149 = scmp.eq.s32.totalorder %s18, 0
    %p150 = por %p148, %p149
    %s152 = sadd.s32 %s151, 1
    %p155 = scmp.eq.s32.totalorder %s12, 1
    %p156 = scmp.ne.s32.totalorder %s151, %s153
    %p157 = scmp.eq.s32.totalorder %s12, 0
    %p158 = por %p156, %p157
    %p159 = scmp.ne.s32.totalorder %s151, %s153
    %p160 = scmp.eq.s32.totalorder %s17, 1
    %p161 = por %p159, %p160
    %p162 = scmp.ne.s32.totalorder %s153, %s154
    %p163 = scmp.eq.s32.totalorder %s17, 0
    %p164 = por %p162, %p163
    %p165 = scmp.ne.s32.totalorder %s153, %s154
    %p166 = scmp.eq.s32.totalorder %s18, 1
    %p167 = por %p165, %p166
    %p169 = scmp.ne.s32.totalorder %s154, %s168
    %p170 = scmp.eq.s32.totalorder %s18, 0
    %p171 = por %p169, %p170
    %s172 = ssub.s32 %s19, %s31
    %s173 = ssub.s32 %s20, %s27
    %s174 = sor.u32 %s172, %s173
    %p175 = scmp.eq.s32.totalorder %s174, 0
    %s177 = sadd.s32 %s176, 1
    %s178 = scalar_select %p175, %s176, %s177
    %p181 = pneg %p175
    %p182 = scmp.eq.s32.totalorder %s12, 1
    %p183 = por %p181, %p182
    %p184 = scmp.ne.s32.totalorder %s176, %s179
    %p185 = scmp.eq.s32.totalorder %s12, 0
    %p186 = por %p184, %p185
    %p187 = scmp.ne.s32.totalorder %s176, %s179
    %p188 = scmp.eq.s32.totalorder %s17, 1
    %p189 = por %p187, %p188
    %p190 = scmp.ne.s32.totalorder %s179, %s180
    %p191 = scmp.eq.s32.totalorder %s17, 0
    %p192 = por %p190, %p191
    %p193 = scmp.ne.s32.totalorder %s179, %s180
    %p194 = scmp.eq.s32.totalorder %s18, 1
    %p195 = por %p193, %p194
    %p197 = scmp.ne.s32.totalorder %s180, %s196
    %p198 = scmp.eq.s32.totalorder %s18, 0
    %p199 = por %p197, %p198
    %p200 = scmp.le.s32.totalorder 1, %s12
    %p201 = scmp.lt.s32.totalorder %s12, 3
    %p202 = pnand %p200, %p201
    %p203 = pneg %p202
    // Predicated region
    $region9: #{basic_block_forward_pallas.5} parent=5 // pred_check
      _
    $region10: #{basic_block_forward_pallas.5} parent=5 // pred_check_branch
      %205 = sbr.rel (%p202) target = $region12
    $region11: #{basic_block_forward_pallas.5} parent=5 // pred_region
      %s206 = ssub.s32 %s12, 1
      // Predicated region
      $region13: #{basic_block_forward_pallas.5} parent=11 // pred_check
        %p207 = pneg %p73
      $region14: #{basic_block_forward_pallas.5} parent=11 // pred_check_branch
        %209 = sbr.rel (%p207) target = $region16
      $region15: #{basic_block_forward_pallas.5} parent=11 // pred_region
        _
      $region16: #{basic_block_forward_pallas.5} parent=11 // pred_fallthru
        _
      // Predicated region
      $region17: #{basic_block_forward_pallas.5} parent=11 // pred_check
        %p210 = pneg %p94
      $region18: #{basic_block_forward_pallas.5} parent=11 // pred_check_branch
        %212 = sbr.rel (%p210) target = $region20
      $region19: #{basic_block_forward_pallas.5} parent=11 // pred_region
        _
      $region20: #{basic_block_forward_pallas.5} parent=11 // pred_fallthru
        _
      // Predicated region
      $region21: #{basic_block_forward_pallas.5} parent=11 // pred_check
        %p213 = pneg %p143
      $region22: #{basic_block_forward_pallas.5} parent=11 // pred_check_branch
        %215 = sbr.rel (%p213) target = $region24
      $region23: #{basic_block_forward_pallas.5} parent=11 // pred_region
        _
      $region24: #{basic_block_forward_pallas.5} parent=11 // pred_fallthru
        _
      // Predicated region
      $region25: #{basic_block_forward_pallas.5} parent=11 // pred_check
        %p216 = pneg %p164
      $region26: #{basic_block_forward_pallas.5} parent=11 // pred_check_branch
        %218 = sbr.rel (%p216) target = $region28
      $region27: #{basic_block_forward_pallas.5} parent=11 // pred_region
        _
      $region28: #{basic_block_forward_pallas.5} parent=11 // pred_fallthru
        _
    $region12: #{basic_block_forward_pallas.5} parent=5 // pred_fallthru
      _
    %p219 = scmp.lt.s32.totalorder %s12, 2
    // Predicated region
    $region29: #{basic_block_forward_pallas.5} parent=5 // pred_check
      %p220 = pneg %p219
    $region30: #{basic_block_forward_pallas.5} parent=5 // pred_check_branch
      %222 = sbr.rel (%p220) target = $region32
    $region31: #{basic_block_forward_pallas.5} parent=5 // pred_region
      // Predicated region
      $region33: #{basic_block_forward_pallas.5} parent=31 // pred_check
        %p223 = pneg %p46
      $region34: #{basic_block_forward_pallas.5} parent=31 // pred_check_branch
        %225 = sbr.rel (%p223) target = $region36
      $region35: #{basic_block_forward_pallas.5} parent=31 // pred_region
        %p226 = scmp.lt.s32.totalorder %s19, 1
        %s227 = scalar_select %p226, %s19, 1
        %p228 = scmp.lt.s32.totalorder %s20, 0
        %s229 = scalar_select %p228, %s20, 0
        %s230 = sadd.s32 %s229, %s227
        %s231 = smul.addr %s230, 8
        %s232 = scalar_lea.vmem %s0, %s231
      $region36: #{basic_block_forward_pallas.5} parent=31 // pred_fallthru
        _
      // Predicated region
      $region37: #{basic_block_forward_pallas.5} parent=31 // pred_check
        %p233 = pneg %p116
      $region38: #{basic_block_forward_pallas.5} parent=31 // pred_check_branch
        %235 = sbr.rel (%p233) target = $region40
      $region39: #{basic_block_forward_pallas.5} parent=31 // pred_region
        %p236 = scmp.lt.s32.totalorder %s19, 1
        %s237 = scalar_select %p236, %s19, 1
        %p238 = scmp.lt.s32.totalorder %s20, 0
        %s239 = scalar_select %p238, %s20, 0
        %s240 = sadd.s32 %s239, %s237
        %s241 = smul.addr %s240, 8
        %s242 = scalar_lea.vmem %s3, %s241
      $region40: #{basic_block_forward_pallas.5} parent=31 // pred_fallthru
        _
    $region32: #{basic_block_forward_pallas.5} parent=5 // pred_fallthru
      _
    %p243 = scmp.le.s32.totalorder 1, %s12
    %p244 = scmp.lt.s32.totalorder %s12, 3
    %p245 = pnand %p243, %p244
    %p246 = pneg %p245
    // Predicated region
    $region41: #{basic_block_forward_pallas.5} parent=5 // pred_check
      _
    $region42: #{basic_block_forward_pallas.5} parent=5 // pred_check_branch
      %248 = sbr.rel (%p245) target = $region44
    $region43: #{basic_block_forward_pallas.5} parent=5 // pred_region
      %s249 = ssub.s32 %s12, 1
      %p250 = scmp.lt.s32.totalorder %s21, 1
      %s251 = scalar_select %p250, %s21, 1
      %p252 = scmp.lt.s32.totalorder %s22, 0
      %s253 = scalar_select %p252, %s22, 0
      %s254 = sadd.s32 %s253, %s251
      %s255 = smul.addr %s254, 8
      %s256 = scalar_lea.vmem %s0, %s255
      %p257 = pneg %p52
      %p258 = pneg %p49
      %p259 = pneg %p73
      %p260 = pneg %p70
      %p261 = pneg %p94
      %p262 = pneg %p91
      %p263 = scmp.lt.s32.totalorder %s21, 1
      %s264 = scalar_select %p263, %s21, 1
      %p265 = scmp.lt.s32.totalorder %s22, 0
      %s266 = scalar_select %p265, %s22, 0
      %s267 = sadd.s32 %s266, %s264
      %s268 = smul.addr %s267, 8
      %s269 = scalar_lea.vmem %s3, %s268
      %p270 = pneg %p122
      %p271 = pneg %p119
      %p272 = pneg %p143
      %p273 = pneg %p140
      %p274 = pneg %p164
      %p275 = pneg %p161
      %p276 = pneg %p192
      %p277 = pneg %p189
      %p278 = scmp.lt.s32.totalorder %s21, 1
      %s279 = scalar_select %p278, %s21, 1
      %p280 = scmp.lt.s32.totalorder %s22, 0
      %s281 = scalar_select %p280, %s22, 0
      %s282 = sadd.s32 %s281, %s279
      %s283 = smul.addr %s282, 8
      %s284 = scalar_lea.vmem %s6, %s283
      %p285 = scmp.lt.s32.totalorder %s21, 1
      %s286 = scalar_select %p285, %s21, 1
      %p287 = scmp.lt.s32.totalorder %s22, 0
      %s288 = scalar_select %p287, %s22, 0
      %s289 = sadd.s32 %s288, %s286
      %s290 = smul.addr %s289, 8
      %s291 = scalar_lea.vmem %s0, %s290
      %p292 = scmp.lt.s32.totalorder %s21, 1
      %s293 = scalar_select %p292, %s21, 1
      %p294 = scmp.lt.s32.totalorder %s22, 0
      %s295 = scalar_select %p294, %s22, 0
      %s296 = sadd.s32 %s295, %s293
      %s297 = smul.addr %s296, 8
      %s298 = scalar_lea.vmem %s3, %s297
      %p299 = scmp.lt.s32.totalorder %s21, 1
      %s300 = scalar_select %p299, %s21, 1
      %p301 = scmp.lt.s32.totalorder %s22, 0
      %s302 = scalar_select %p301, %s22, 0
      %s303 = sadd.s32 %s302, %s300
      %s304 = smul.addr %s303, 8
      %s305 = scalar_lea.vmem %s6, %s304
      %v306 = vld [vmem:[%s291] sm:$0xff]
      %v307 = vld [vmem:[%s1] sm:$0x1]
      %v309 = vlaneseq
      %v310 = vshrl.u32 %v309, 7
      %v311 = vsub.s32 0, %v310
      %v312 = vrot.slane %v307, %v311
      %v314 = vmul.f32 %v306, %v312
      %v315 = vld [vmem:[%s2] sm:$0x1]
      %v317 = vlaneseq
      %v318 = vshrl.u32 %v317, 7
      %v319 = vsub.s32 0, %v318
      %v320 = vrot.slane %v315, %v319
      %v322 = vadd.f32 %v314, %v320
      %v323 = vld [vmem:[%s298] sm:$0xff]
      %v324 = vld [vmem:[%s4] sm:$0x1]
      %v326 = vlaneseq
      %v327 = vshrl.u32 %v326, 7
      %v328 = vsub.s32 0, %v327
      %v329 = vrot.slane %v324, %v328
      %v331 = vmul.f32 %v323, %v329
      %v332 = vadd.f32 %v322, %v331
      %v333 = vld [vmem:[%s5] sm:$0x1]
      %v335 = vlaneseq
      %v336 = vshrl.u32 %v335, 7
      %v337 = vsub.s32 0, %v336
      %v338 = vrot.slane %v333, %v337
      %v340 = vadd.f32 %v332, %v338
      %v341 = vmax.f32 %v340, 0.0
      %342 = vst [vmem:[%s305] sm:$0xff] %v341
      %p343 = scmp.lt.s32.totalorder %s21, 1
      %s344 = scalar_select %p343, %s21, 1
      %p345 = scmp.lt.s32.totalorder %s22, 0
      %s346 = scalar_select %p345, %s22, 0
      %s347 = sadd.s32 %s346, %s344
      %s348 = smul.addr %s347, 8
      %s349 = scalar_lea.vmem %s6, %s348
      // Predicated region
      $region45: #{basic_block_forward_pallas.5} parent=43 // pred_check
        %p350 = pneg %p189
      $region46: #{basic_block_forward_pallas.5} parent=43 // pred_check_branch
        %352 = sbr.rel (%p350) target = $region48
      $region47: #{basic_block_forward_pallas.5} parent=43 // pred_region
        _
      $region48: #{basic_block_forward_pallas.5} parent=43 // pred_fallthru
        _
    $region44: #{basic_block_forward_pallas.5} parent=5 // pred_fallthru
      _
    %p353 = scmp.le.s32.totalorder 2, %s12
    // Predicated region
    $region49: #{basic_block_forward_pallas.5} parent=5 // pred_check
      %p354 = pneg %p353
    $region50: #{basic_block_forward_pallas.5} parent=5 // pred_check_branch
      %356 = sbr.rel (%p354) target = $region52
    $region51: #{basic_block_forward_pallas.5} parent=5 // pred_region
      %s357 = ssub.s32 %s12, 2
      // Predicated region
      $region53: #{basic_block_forward_pallas.5} parent=51 // pred_check
        %p358 = pneg %p195
      $region54: #{basic_block_forward_pallas.5} parent=51 // pred_check_branch
        %360 = sbr.rel (%p358) target = $region56
      $region55: #{basic_block_forward_pallas.5} parent=51 // pred_region
        %p361 = scmp.lt.s32.totalorder %s23, 1
        %s362 = scalar_select %p361, %s23, 1
        %p363 = scmp.lt.s32.totalorder %s24, 0
        %s364 = scalar_select %p363, %s24, 0
        %s365 = sadd.s32 %s364, %s362
        %s366 = smul.addr %s365, 8
        %s367 = scalar_lea.vmem %s6, %s366
      $region56: #{basic_block_forward_pallas.5} parent=51 // pred_fallthru
        _
    $region52: #{basic_block_forward_pallas.5} parent=5 // pred_fallthru
      _
  $region6: #{basic_block_forward_pallas.5} parent=0 // loop_footer
    %s16 = sadd.s32 1, %s12
  $region7: #{basic_block_forward_pallas.5} parent=0 // loop_footer_branch
    %11 = sbr.rel target = $region3
  $region8: #{basic_block_forward_pallas.5} parent=0 // loop_exit
    _

// kernel: basic_block_forward_pallas.4
$region0: #{basic_block_forward_pallas.4}
  #allocation0 [shape = 'u32[]', space=smem, size = 0x4, offset = 0x4, fixed_abs, tag = 'smem constant byte address 0x4 - core index']
  #allocation1 [shape = 'u32[144,128]{1,0:T(1,128)}', space=vmem, size = 0x12000, scoped, tag = 'internal scratch']
  %s0 = inlined_call_operand.vmem [shape: f32[2,16,128], index: 0, kind: input, shape index: {}, may-alias: {0,1}]
  %s1 = inlined_call_operand.vmem [shape: f32[2,16,128], index: 1, kind: input, shape index: {}, may-alias: {0,1}]
  %s2 = inlined_call_operand.vmem [shape: f32[384,128], index: 2, kind: input, shape index: {}]
  %s3 = inlined_call_operand.vmem [shape: f32[1,128], index: 3, kind: input, shape index: {}]
  %s4 = inlined_call_operand.vmem [shape: f32[1,128], index: 4, kind: input, shape index: {}]
  %s5 = inlined_call_operand.vmem [shape: f32[2,8,128], index: 5, kind: output, shape index: {0}]
  %s6 = inlined_call_operand.vmem [shape: f32[2,1,8,128], index: 6, kind: output, shape index: {1}]
  %7 = xla_tuple %s5, %s6
  %s8 = sld [smem:[#allocation0]]
  $region61: #{basic_block_forward_pallas.4} parent=0
    _
  %s10 = ssub.s32 1, %s8
  %s11 = scalar_select 0, %s10, %s8
  loop: start=0, step=1, limit=4
  $region2: #{basic_block_forward_pallas.4} parent=0 // loop_pre_header
    _
  $region3: #{basic_block_forward_pallas.4} parent=0 // loop_header
    %s13 = sphi 0, %s17
    %p14 = scmp.ge.s32.totalorder %s13, 4
    %s20 = sphi 0, %s32
    %s21 = sphi 0, %s28
    %s22 = sphi 0, %s20
    %s23 = sphi 0, %s21
    %s24 = sphi 0, %s22
    %s25 = sphi 0, %s23
    %s37 = sphi 0, %s39
    %s40 = sphi 0, %s37
    %s41 = sphi 0, %s40
    %s57 = sphi 0, %s41
    %s67 = sphi 0, %s69
    %s70 = sphi 0, %s67
    %s71 = sphi 0, %s70
    %s87 = sphi 0, %s71
    %s91 = sphi 0, %s91
    %s93 = sphi 0, %s91
    %s94 = sphi 0, %s93
    %s108 = sphi 0, %s94
    %s112 = sphi 0, %s112
    %s114 = sphi 0, %s112
    %s115 = sphi 0, %s114
    %s129 = sphi 0, %s115
    %s133 = sphi 0, %s133
    %s135 = sphi 0, %s133
    %s136 = sphi 0, %s135
    %s150 = sphi 0, %s136
    %s158 = sphi 0, %s160
    %s161 = sphi 0, %s158
    %s162 = sphi 0, %s161
    %s178 = sphi 0, %s162
    %s186 = sphi 0, %s188
    %s189 = sphi 0, %s186
    %s190 = sphi 0, %s189
    %s206 = sphi 0, %s190
  $region4: #{basic_block_forward_pallas.4} parent=0 // loop_header_branch
    %16 = sbr.rel (%p14) target = $region8
  $region5: #{basic_block_forward_pallas.4} parent=0 // loop_body
    %s18 = ssub.s32 %s13, 1
    %s19 = ssub.s32 %s13, 2
    %s26 = sadd.s32 1, %s21
    %p27 = scmp.ge.s32.totalorder %s26, 1
    %s28 = scalar_select %p27, 0, %s26
    %s29 = sadd.s32 1, %s20
    %s30 = scalar_select %p27, %s29, %s20
    %p31 = scmp.ge.s32.totalorder %s30, 2
    %s32 = scalar_select %p31, 0, %s30
    %s33 = ssub.s32 %s20, %s32
    %s34 = ssub.s32 %s21, %s28
    %s35 = sor.u32 %s33, %s34
    %p36 = scmp.eq.s32.totalorder %s35, 0
    %s38 = sadd.s32 %s37, 1
    %s39 = scalar_select %p36, %s37, %s38
    %p42 = pneg %p36
    %p43 = scmp.eq.s32.totalorder %s13, 1
    %p44 = por %p42, %p43
    %p45 = scmp.ne.s32.totalorder %s37, %s40
    %p46 = scmp.eq.s32.totalorder %s13, 0
    %p47 = por %p45, %p46
    %p48 = scmp.ne.s32.totalorder %s37, %s40
    %p49 = scmp.eq.s32.totalorder %s18, 1
    %p50 = por %p48, %p49
    %p51 = scmp.ne.s32.totalorder %s40, %s41
    %p52 = scmp.eq.s32.totalorder %s18, 0
    %p53 = por %p51, %p52
    %p54 = scmp.ne.s32.totalorder %s40, %s41
    %p55 = scmp.eq.s32.totalorder %s19, 1
    %p56 = por %p54, %p55
    %p58 = scmp.ne.s32.totalorder %s41, %s57
    %p59 = scmp.eq.s32.totalorder %s19, 0
    %p60 = por %p58, %p59
    %s61 = sadd.s32 %s21, 1
    %s62 = sadd.s32 %s28, 1
    %s63 = ssub.s32 %s20, %s32
    %s64 = ssub.s32 %s61, %s62
    %s65 = sor.u32 %s63, %s64
    %p66 = scmp.eq.s32.totalorder %s65, 0
    %s68 = sadd.s32 %s67, 1
    %s69 = scalar_select %p66, %s67, %s68
    %p72 = pneg %p66
    %p73 = scmp.eq.s32.totalorder %s13, 1
    %p74 = por %p72, %p73
    %p75 = scmp.ne.s32.totalorder %s67, %s70
    %p76 = scmp.eq.s32.totalorder %s13, 0
    %p77 = por %p75, %p76
    %p78 = scmp.ne.s32.totalorder %s67, %s70
    %p79 = scmp.eq.s32.totalorder %s18, 1
    %p80 = por %p78, %p79
    %p81 = scmp.ne.s32.totalorder %s70, %s71
    %p82 = scmp.eq.s32.totalorder %s18, 0
    %p83 = por %p81, %p82
    %p84 = scmp.ne.s32.totalorder %s70, %s71
    %p85 = scmp.eq.s32.totalorder %s19, 1
    %p86 = por %p84, %p85
    %p88 = scmp.ne.s32.totalorder %s71, %s87
    %p89 = scmp.eq.s32.totalorder %s19, 0
    %p90 = por %p88, %p89
    %s92 = sadd.s32 %s91, 1
    %p95 = scmp.eq.s32.totalorder %s13, 1
    %p96 = scmp.ne.s32.totalorder %s91, %s93
    %p97 = scmp.eq.s32.totalorder %s13, 0
    %p98 = por %p96, %p97
    %p99 = scmp.ne.s32.totalorder %s91, %s93
    %p100 = scmp.eq.s32.totalorder %s18, 1
    %p101 = por %p99, %p100
    %p102 = scmp.ne.s32.totalorder %s93, %s94
    %p103 = scmp.eq.s32.totalorder %s18, 0
    %p104 = por %p102, %p103
    %p105 = scmp.ne.s32.totalorder %s93, %s94
    %p106 = scmp.eq.s32.totalorder %s19, 1
    %p107 = por %p105, %p106
    %p109 = scmp.ne.s32.totalorder %s94, %s108
    %p110 = scmp.eq.s32.totalorder %s19, 0
    %p111 = por %p109, %p110
    %s113 = sadd.s32 %s112, 1
    %p116 = scmp.eq.s32.totalorder %s13, 1
    %p117 = scmp.ne.s32.totalorder %s112, %s114
    %p118 = scmp.eq.s32.totalorder %s13, 0
    %p119 = por %p117, %p118
    %p120 = scmp.ne.s32.totalorder %s112, %s114
    %p121 = scmp.eq.s32.totalorder %s18, 1
    %p122 = por %p120, %p121
    %p123 = scmp.ne.s32.totalorder %s114, %s115
    %p124 = scmp.eq.s32.totalorder %s18, 0
    %p125 = por %p123, %p124
    %p126 = scmp.ne.s32.totalorder %s114, %s115
    %p127 = scmp.eq.s32.totalorder %s19, 1
    %p128 = por %p126, %p127
    %p130 = scmp.ne.s32.totalorder %s115, %s129
    %p131 = scmp.eq.s32.totalorder %s19, 0
    %p132 = por %p130, %p131
    %s134 = sadd.s32 %s133, 1
    %p137 = scmp.eq.s32.totalorder %s13, 1
    %p138 = scmp.ne.s32.totalorder %s133, %s135
    %p139 = scmp.eq.s32.totalorder %s13, 0
    %p140 = por %p138, %p139
    %p141 = scmp.ne.s32.totalorder %s133, %s135
    %p142 = scmp.eq.s32.totalorder %s18, 1
    %p143 = por %p141, %p142
    %p144 = scmp.ne.s32.totalorder %s135, %s136
    %p145 = scmp.eq.s32.totalorder %s18, 0
    %p146 = por %p144, %p145
    %p147 = scmp.ne.s32.totalorder %s135, %s136
    %p148 = scmp.eq.s32.totalorder %s19, 1
    %p149 = por %p147, %p148
    %p151 = scmp.ne.s32.totalorder %s136, %s150
    %p152 = scmp.eq.s32.totalorder %s19, 0
    %p153 = por %p151, %p152
    %s154 = ssub.s32 %s20, %s32
    %s155 = ssub.s32 %s21, %s28
    %s156 = sor.u32 %s154, %s155
    %p157 = scmp.eq.s32.totalorder %s156, 0
    %s159 = sadd.s32 %s158, 1
    %s160 = scalar_select %p157, %s158, %s159
    %p163 = pneg %p157
    %p164 = scmp.eq.s32.totalorder %s13, 1
    %p165 = por %p163, %p164
    %p166 = scmp.ne.s32.totalorder %s158, %s161
    %p167 = scmp.eq.s32.totalorder %s13, 0
    %p168 = por %p166, %p167
    %p169 = scmp.ne.s32.totalorder %s158, %s161
    %p170 = scmp.eq.s32.totalorder %s18, 1
    %p171 = por %p169, %p170
    %p172 = scmp.ne.s32.totalorder %s161, %s162
    %p173 = scmp.eq.s32.totalorder %s18, 0
    %p174 = por %p172, %p173
    %p175 = scmp.ne.s32.totalorder %s161, %s162
    %p176 = scmp.eq.s32.totalorder %s19, 1
    %p177 = por %p175, %p176
    %p179 = scmp.ne.s32.totalorder %s162, %s178
    %p180 = scmp.eq.s32.totalorder %s19, 0
    %p181 = por %p179, %p180
    %s182 = ssub.s32 %s20, %s32
    %s183 = ssub.s32 %s21, %s28
    %s184 = sor.u32 %s182, %s183
    %p185 = scmp.eq.s32.totalorder %s184, 0
    %s187 = sadd.s32 %s186, 1
    %s188 = scalar_select %p185, %s186, %s187
    %p191 = pneg %p185
    %p192 = scmp.eq.s32.totalorder %s13, 1
    %p193 = por %p191, %p192
    %p194 = scmp.ne.s32.totalorder %s186, %s189
    %p195 = scmp.eq.s32.totalorder %s13, 0
    %p196 = por %p194, %p195
    %p197 = scmp.ne.s32.totalorder %s186, %s189
    %p198 = scmp.eq.s32.totalorder %s18, 1
    %p199 = por %p197, %p198
    %p200 = scmp.ne.s32.totalorder %s189, %s190
    %p201 = scmp.eq.s32.totalorder %s18, 0
    %p202 = por %p200, %p201
    %p203 = scmp.ne.s32.totalorder %s189, %s190
    %p204 = scmp.eq.s32.totalorder %s19, 1
    %p205 = por %p203, %p204
    %p207 = scmp.ne.s32.totalorder %s190, %s206
    %p208 = scmp.eq.s32.totalorder %s19, 0
    %p209 = por %p207, %p208
    %p210 = scmp.le.s32.totalorder 1, %s13
    %p211 = scmp.lt.s32.totalorder %s13, 3
    %p212 = pnand %p210, %p211
    %p213 = pneg %p212
    // Predicated region
    $region9: #{basic_block_forward_pallas.4} parent=5 // pred_check
      _
    $region10: #{basic_block_forward_pallas.4} parent=5 // pred_check_branch
      %215 = sbr.rel (%p212) target = $region12
    $region11: #{basic_block_forward_pallas.4} parent=5 // pred_region
      %s216 = ssub.s32 %s13, 1
      // Predicated region
      $region13: #{basic_block_forward_pallas.4} parent=11 // pred_check
        %p217 = pneg %p104
      $region14: #{basic_block_forward_pallas.4} parent=11 // pred_check_branch
        %219 = sbr.rel (%p217) target = $region16
      $region15: #{basic_block_forward_pallas.4} parent=11 // pred_region
        _
      $region16: #{basic_block_forward_pallas.4} parent=11 // pred_fallthru
        _
      // Predicated region
      $region17: #{basic_block_forward_pallas.4} parent=11 // pred_check
        %p220 = pneg %p125
      $region18: #{basic_block_forward_pallas.4} parent=11 // pred_check_branch
        %222 = sbr.rel (%p220) target = $region20
      $region19: #{basic_block_forward_pallas.4} parent=11 // pred_region
        _
      $region20: #{basic_block_forward_pallas.4} parent=11 // pred_fallthru
        _
      // Predicated region
      $region21: #{basic_block_forward_pallas.4} parent=11 // pred_check
        %p223 = pneg %p146
      $region22: #{basic_block_forward_pallas.4} parent=11 // pred_check_branch
        %225 = sbr.rel (%p223) target = $region24
      $region23: #{basic_block_forward_pallas.4} parent=11 // pred_region
        _
      $region24: #{basic_block_forward_pallas.4} parent=11 // pred_fallthru
        _
    $region12: #{basic_block_forward_pallas.4} parent=5 // pred_fallthru
      _
    %p226 = scmp.lt.s32.totalorder %s13, 2
    // Predicated region
    $region25: #{basic_block_forward_pallas.4} parent=5 // pred_check
      %p227 = pneg %p226
    $region26: #{basic_block_forward_pallas.4} parent=5 // pred_check_branch
      %229 = sbr.rel (%p227) target = $region28
    $region27: #{basic_block_forward_pallas.4} parent=5 // pred_region
      // Predicated region
      $region29: #{basic_block_forward_pallas.4} parent=27 // pred_check
        %p230 = pneg %p47
      $region30: #{basic_block_forward_pallas.4} parent=27 // pred_check_branch
        %232 = sbr.rel (%p230) target = $region32
      $region31: #{basic_block_forward_pallas.4} parent=27 // pred_region
        %p233 = scmp.lt.s32.totalorder %s20, 1
        %s234 = scalar_select %p233, %s20, 1
        %p235 = scmp.lt.s32.totalorder %s21, 1
        %s236 = scalar_select %p235, %s21, 1
        %s237 = smul.addr %s234, 2
        %s238 = sadd.s32 %s236, %s237
        %s239 = smul.addr %s238, 8
        %s240 = scalar_lea.vmem %s0, %s239
      $region32: #{basic_block_forward_pallas.4} parent=27 // pred_fallthru
        _
      // Predicated region
      $region33: #{basic_block_forward_pallas.4} parent=27 // pred_check
        %p241 = pneg %p77
      $region34: #{basic_block_forward_pallas.4} parent=27 // pred_check_branch
        %243 = sbr.rel (%p241) target = $region36
      $region35: #{basic_block_forward_pallas.4} parent=27 // pred_region
        %s244 = sadd.s32 %s21, 1
        %p245 = scmp.lt.s32.totalorder %s20, 1
        %s246 = scalar_select %p245, %s20, 1
        %p247 = scmp.lt.s32.totalorder %s244, 1
        %s248 = scalar_select %p247, %s244, 1
        %s249 = smul.addr %s246, 2
        %s250 = sadd.s32 %s248, %s249
        %s251 = smul.addr %s250, 8
        %s252 = scalar_lea.vmem %s1, %s251
        %s253 = sadd.s32 %s21, 1
      $region36: #{basic_block_forward_pallas.4} parent=27 // pred_fallthru
        _
    $region28: #{basic_block_forward_pallas.4} parent=5 // pred_fallthru
      _
    %p254 = scmp.le.s32.totalorder 1, %s13
    %p255 = scmp.lt.s32.totalorder %s13, 3
    %p256 = pnand %p254, %p255
    %p257 = pneg %p256
    // Predicated region
    $region37: #{basic_block_forward_pallas.4} parent=5 // pred_check
      _
    $region38: #{basic_block_forward_pallas.4} parent=5 // pred_check_branch
      %259 = sbr.rel (%p256) target = $region40
    $region39: #{basic_block_forward_pallas.4} parent=5 // pred_region
      %s260 = ssub.s32 %s13, 1
      %p261 = scmp.lt.s32.totalorder %s22, 1
      %s262 = scalar_select %p261, %s22, 1
      %p263 = scmp.lt.s32.totalorder %s23, 1
      %s264 = scalar_select %p263, %s23, 1
      %s265 = smul.addr %s262, 2
      %s266 = sadd.s32 %s264, %s265
      %s267 = smul.addr %s266, 8
      %s268 = scalar_lea.vmem %s0, %s267
      %p269 = pneg %p53
      %p270 = pneg %p50
      %s271 = sadd.s32 %s23, 1
      %p272 = scmp.lt.s32.totalorder %s22, 1
      %s273 = scalar_select %p272, %s22, 1
      %p274 = scmp.lt.s32.totalorder %s271, 1
      %s275 = scalar_select %p274, %s271, 1
      %s276 = smul.addr %s273, 2
      %s277 = sadd.s32 %s275, %s276
      %s278 = smul.addr %s277, 8
      %s279 = scalar_lea.vmem %s1, %s278
      %p280 = pneg %p83
      %p281 = pneg %p80
      %p282 = pneg %p104
      %p283 = pneg %p101
      %p284 = pneg %p125
      %p285 = pneg %p122
      %p286 = pneg %p146
      %p287 = pneg %p143
      %p288 = pneg %p174
      %p289 = pneg %p171
      %p290 = scmp.lt.s32.totalorder %s22, 1
      %s291 = scalar_select %p290, %s22, 1
      %p292 = scmp.lt.s32.totalorder %s23, 0
      %s293 = scalar_select %p292, %s23, 0
      %s294 = sadd.s32 %s293, %s291
      %s295 = smul.addr %s294, 8
      %s296 = scalar_lea.vmem %s5, %s295
      %p297 = pneg %p202
      %p298 = pneg %p199
      %p299 = scmp.lt.s32.totalorder %s22, 1
      %s300 = scalar_select %p299, %s22, 1
      %p301 = scmp.lt.s32.totalorder %s23, 0
      %s302 = scalar_select %p301, %s23, 0
      %s303 = sadd.s32 %s302, %s300
      %s304 = smul.addr %s303, 8
      %s305 = scalar_lea.vmem %s6, %s304
      %p306 = scmp.lt.s32.totalorder %s22, 1
      %s307 = scalar_select %p306, %s22, 1
      %p308 = scmp.lt.s32.totalorder %s23, 1
      %s309 = scalar_select %p308, %s23, 1
      %s310 = smul.addr %s307, 2
      %s311 = sadd.s32 %s309, %s310
      %s312 = smul.addr %s311, 8
      %s313 = scalar_lea.vmem %s0, %s312
      %s314 = sadd.s32 %s23, 1
      %p315 = scmp.lt.s32.totalorder %s22, 1
      %s316 = scalar_select %p315, %s22, 1
      %p317 = scmp.lt.s32.totalorder %s314, 1
      %s318 = scalar_select %p317, %s314, 1
      %s319 = smul.addr %s316, 2
      %s320 = sadd.s32 %s318, %s319
      %s321 = smul.addr %s320, 8
      %s322 = scalar_lea.vmem %s1, %s321
      %s323 = sadd.s32 %s23, 1
      %p324 = scmp.lt.s32.totalorder %s22, 1
      %s325 = scalar_select %p324, %s22, 1
      %p326 = scmp.lt.s32.totalorder %s23, 0
      %s327 = scalar_select %p326, %s23, 0
      %s328 = sadd.s32 %s327, %s325
      %s329 = smul.addr %s328, 8
      %s330 = scalar_lea.vmem %s5, %s329
      %p331 = scmp.lt.s32.totalorder %s22, 1
      %s332 = scalar_select %p331, %s22, 1
      %p333 = scmp.lt.s32.totalorder %s23, 0
      %s334 = scalar_select %p333, %s23, 0
      %s335 = sadd.s32 %s334, %s332
      %s336 = smul.addr %s335, 8
      %s337 = scalar_lea.vmem %s6, %s336
      %v338 = vld [vmem:[%s313] sm:$0xff]
      %v339 = vld [vmem:[%s322] sm:$0xff]
      %v340 = vlaneseq
      %v341 = vshrl.u32 %v340, 7
      %v342 = vadd.s32 %v341, 8
      %s343 = smul.u32 %s23, 8
      %v344 = vstv %s343
      %v345 = vadd.s32 %v341, %v344
      %v346 = vadd.s32 %v342, %v344
      %vm347 = vcmp.ge.s32.totalorder %v345, 1
      %vm348 = vcmp.ge.s32.totalorder %v346, 1
      %vm349 = vcmp.lt.s32.totalorder %v345, 5
      %vm350 = vcmp.lt.s32.totalorder %v346, 5
      %vm351 = vmand %vm347, %vm349
      %vm352 = vmand %vm348, %vm350
      %v353 = vsel %vm351, %v338, 0.0
      %v354 = vsel %vm352, %v339, 0.0
      %v355 = vld [vmem:[%s3] sm:$0x1]
      %v357 = vlaneseq
      %v358 = vshrl.u32 %v357, 7
      %v359 = vsub.s32 0, %v358
      %v360 = vrot.slane %v355, %v359
      %v362 = vmul.f32 %v353, %v360
      %v363 = vmul.f32 %v354, %v360
      %v364 = vld [vmem:[%s4] sm:$0x1]
      %v366 = vlaneseq
      %v367 = vshrl.u32 %v366, 7
      %v368 = vsub.s32 0, %v367
      %v369 = vrot.slane %v364, %v368
      %v371 = vadd.f32 %v362, %v369
      %v372 = vadd.f32 %v363, %v369
      %v373 = vmax.f32 %v371, 0.0
      %v374 = vmax.f32 %v372, 0.0
      %v375 = vsel %vm351, %v373, 0.0
      %v376 = vsel %vm352, %v374, 0.0
      %vm379 = vcmask 1046528
      %v380 = vrot.slane %v375, 1
      %v381 = vrot.slane %v376, 1
      %v382 = vsel %vm379, %v380, %v381
      %vm384 = vcmask 1045504
      %v385 = vrot.slane %v375, 2
      %v386 = vrot.slane %v376, 2
      %v387 = vsel %vm384, %v385, %v386
      %v389 = vld [vmem:[%s2] sm:$0xff]
      %v390 = vld [vmem:[%s2 + $0x8] sm:$0xff]
      %v391 = vld [vmem:[%s2 + $0x10] sm:$0xff]
      %v392 = vld [vmem:[%s2 + $0x18] sm:$0xff]
      %v393 = vld [vmem:[%s2 + $0x20] sm:$0xff]
      %v394 = vld [vmem:[%s2 + $0x28] sm:$0xff]
      %v395 = vld [vmem:[%s2 + $0x30] sm:$0xff]
      %v396 = vld [vmem:[%s2 + $0x38] sm:$0xff]
      %v397 = vld [vmem:[%s2 + $0x40] sm:$0xff]
      %v398 = vld [vmem:[%s2 + $0x48] sm:$0xff]
      %v399 = vld [vmem:[%s2 + $0x50] sm:$0xff]
      %v400 = vld [vmem:[%s2 + $0x58] sm:$0xff]
      %v401 = vld [vmem:[%s2 + $0x60] sm:$0xff]
      %v402 = vld [vmem:[%s2 + $0x68] sm:$0xff]
      %v403 = vld [vmem:[%s2 + $0x70] sm:$0xff]
      %v404 = vld [vmem:[%s2 + $0x78] sm:$0xff]
      %v405 = vld [vmem:[%s2 + $0x80] sm:$0xff]
      %v406 = vld [vmem:[%s2 + $0x88] sm:$0xff]
      %v407 = vld [vmem:[%s2 + $0x90] sm:$0xff]
      %v408 = vld [vmem:[%s2 + $0x98] sm:$0xff]
      %v409 = vld [vmem:[%s2 + $0xa0] sm:$0xff]
      %v410 = vld [vmem:[%s2 + $0xa8] sm:$0xff]
      %v411 = vld [vmem:[%s2 + $0xb0] sm:$0xff]
      %v412 = vld [vmem:[%s2 + $0xb8] sm:$0xff]
      %v413 = vld [vmem:[%s2 + $0xc0] sm:$0xff]
      %v414 = vld [vmem:[%s2 + $0xc8] sm:$0xff]
      %v415 = vld [vmem:[%s2 + $0xd0] sm:$0xff]
      %v416 = vld [vmem:[%s2 + $0xd8] sm:$0xff]
      %v417 = vld [vmem:[%s2 + $0xe0] sm:$0xff]
      %v418 = vld [vmem:[%s2 + $0xe8] sm:$0xff]
      %v419 = vld [vmem:[%s2 + $0xf0] sm:$0xff]
      %v420 = vld [vmem:[%s2 + $0xf8] sm:$0xff]
      %v421 = vld [vmem:[%s2 + $0x100] sm:$0xff]
      %v422 = vld [vmem:[%s2 + $0x108] sm:$0xff]
      %v423 = vld [vmem:[%s2 + $0x110] sm:$0xff]
      %v424 = vld [vmem:[%s2 + $0x118] sm:$0xff]
      %v425 = vld [vmem:[%s2 + $0x120] sm:$0xff]
      %v426 = vld [vmem:[%s2 + $0x128] sm:$0xff]
      %v427 = vld [vmem:[%s2 + $0x130] sm:$0xff]
      %v428 = vld [vmem:[%s2 + $0x138] sm:$0xff]
      %v429 = vld [vmem:[%s2 + $0x140] sm:$0xff]
      %v430 = vld [vmem:[%s2 + $0x148] sm:$0xff]
      %v431 = vld [vmem:[%s2 + $0x150] sm:$0xff]
      %v432 = vld [vmem:[%s2 + $0x158] sm:$0xff]
      %v433 = vld [vmem:[%s2 + $0x160] sm:$0xff]
      %v434 = vld [vmem:[%s2 + $0x168] sm:$0xff]
      %v435 = vld [vmem:[%s2 + $0x170] sm:$0xff]
      %v436 = vld [vmem:[%s2 + $0x178] sm:$0xff]
      %437 = vmatprep.subr.mxu0 0.0
      %438 = vmatpush1.msra.mxu0 %v389
      %439 = vmatprep.subr.mxu0 0.0
      %440 = vmatpush1.msra.mxu0 %v390
      %441 = vmatprep.subr.mxu0 0.0
      %442 = vmatpush1.msra.mxu0 %v391
      %443 = vmatprep.subr.mxu0 0.0
      %444 = vmatpush1.msra.mxu0 %v392
      %445 = vmatprep.subr.mxu0 0.0
      %446 = vmatpush1.msra.mxu0 %v393
      %447 = vmatprep.subr.mxu0 0.0
      %448 = vmatpush1.msra.mxu0 %v394
      %449 = vmatprep.subr.mxu0 0.0
      %450 = vmatpush1.msra.mxu0 %v395
      %451 = vmatprep.subr.mxu0 0.0
      %452 = vmatpush1.msra.mxu0 %v396
      %453 = vmatprep.subr.mxu0 0.0
      %454 = vmatpush1.msra.mxu0 %v397
      %455 = vmatprep.subr.mxu0 0.0
      %456 = vmatpush1.msra.mxu0 %v398
      %457 = vmatprep.subr.mxu0 0.0
      %458 = vmatpush1.msra.mxu0 %v399
      %459 = vmatprep.subr.mxu0 0.0
      %460 = vmatpush1.msra.mxu0 %v400
      %461 = vmatprep.subr.mxu0 0.0
      %462 = vmatpush1.msra.mxu0 %v401
      %463 = vmatprep.subr.mxu0 0.0
      %464 = vmatpush1.msra.mxu0 %v402
      %465 = vmatprep.subr.mxu0 0.0
      %466 = vmatpush1.msra.mxu0 %v403
      %467 = vmatprep.subr.mxu0 0.0
      %468 = vmatpush1.msra.mxu0 %v404
      %469 = vmatprep.subr.mxu0 0.0
      %470 = vmatpush1.msra.mxu0 %v405
      %471 = vmatprep.subr.mxu0 0.0
      %472 = vmatpush1.msra.mxu0 %v406
      %473 = vmatprep.subr.mxu0 0.0
      %474 = vmatpush1.msra.mxu0 %v407
      %475 = vmatprep.subr.mxu0 0.0
      %476 = vmatpush1.msra.mxu0 %v408
      %477 = vmatprep.subr.mxu0 0.0
      %478 = vmatpush1.msra.mxu0 %v409
      %479 = vmatprep.subr.mxu0 0.0
      %480 = vmatpush1.msra.mxu0 %v410
      %481 = vmatprep.subr.mxu0 0.0
      %482 = vmatpush1.msra.mxu0 %v411
      %483 = vmatprep.subr.mxu0 0.0
      %484 = vmatpush1.msra.mxu0 %v412
      %485 = vmatprep.subr.mxu0 0.0
      %486 = vmatpush1.msra.mxu0 %v413
      %487 = vmatprep.subr.mxu0 0.0
      %488 = vmatpush1.msra.mxu0 %v414
      %489 = vmatprep.subr.mxu0 0.0
      %490 = vmatpush1.msra.mxu0 %v415
      %491 = vmatprep.subr.mxu0 0.0
      %492 = vmatpush1.msra.mxu0 %v416
      %493 = vmatprep.subr.mxu0 0.0
      %494 = vmatpush1.msra.mxu0 %v417
      %495 = vmatprep.subr.mxu0 0.0
      %496 = vmatpush1.msra.mxu0 %v418
      %497 = vmatprep.subr.mxu0 0.0
      %498 = vmatpush1.msra.mxu0 %v419
      %499 = vmatprep.subr.mxu0 0.0
      %500 = vmatpush1.msra.mxu0 %v420
      %501 = vmatprep.mubr.f32.mxu0 %v382
      %502 = vmatmul.mubr.f32.gmra.mrb[0].mxu0 %v375
      %v503 = vpop.f32.mrb[0].mxu0
      %v504 = vadd.f32 0.0, %v503
      %v505 = vpop.f32.mrb[0].mxu0
      %506 = vdwg.mxu0
      %507 = vmatprep.subr.mxu0 0.0
      %508 = vmatpush1.msra.mxu0 %v421
      %509 = vmatprep.subr.mxu0 0.0
      %510 = vmatpush1.msra.mxu0 %v422
      %511 = vmatprep.subr.mxu0 0.0
      %512 = vmatpush1.msra.mxu0 %v423
      %513 = vmatprep.subr.mxu0 0.0
      %514 = vmatpush1.msra.mxu0 %v424
      %515 = vmatprep.subr.mxu0 0.0
      %516 = vmatpush1.msra.mxu0 %v425
      %517 = vmatprep.subr.mxu0 0.0
      %518 = vmatpush1.msra.mxu0 %v426
      %519 = vmatprep.subr.mxu0 0.0
      %520 = vmatpush1.msra.mxu0 %v427
      %521 = vmatprep.subr.mxu0 0.0
      %522 = vmatpush1.msra.mxu0 %v428
      %523 = vmatprep.subr.mxu0 0.0
      %524 = vmatpush1.msra.mxu0 %v429
      %525 = vmatprep.subr.mxu0 0.0
      %526 = vmatpush1.msra.mxu0 %v430
      %527 = vmatprep.subr.mxu0 0.0
      %528 = vmatpush1.msra.mxu0 %v431
      %529 = vmatprep.subr.mxu0 0.0
      %530 = vmatpush1.msra.mxu0 %v432
      %531 = vmatprep.subr.mxu0 0.0
      %532 = vmatpush1.msra.mxu0 %v433
      %533 = vmatprep.subr.mxu0 0.0
      %534 = vmatpush1.msra.mxu0 %v434
      %535 = vmatprep.subr.mxu0 0.0
      %536 = vmatpush1.msra.mxu0 %v435
      %537 = vmatprep.subr.mxu0 0.0
      %538 = vmatpush1.msra.mxu0 %v436
      %539 = vmatprep.subr.mxu0 0.0
      %540 = vmatpush1.msra.mxu0 0.0
      %541 = vmatprep.subr.mxu0 0.0
      %542 = vmatpush1.msra.mxu0 0.0
      %543 = vmatprep.subr.mxu0 0.0
      %544 = vmatpush1.msra.mxu0 0.0
      %545 = vmatprep.subr.mxu0 0.0
      %546 = vmatpush1.msra.mxu0 0.0
      %547 = vmatprep.subr.mxu0 0.0
      %548 = vmatpush1.msra.mxu0 0.0
      %549 = vmatprep.subr.mxu0 0.0
      %550 = vmatpush1.msra.mxu0 0.0
      %551 = vmatprep.subr.mxu0 0.0
      %552 = vmatpush1.msra.mxu0 0.0
      %553 = vmatprep.subr.mxu0 0.0
      %554 = vmatpush1.msra.mxu0 0.0
      %555 = vmatprep.subr.mxu0 0.0
      %556 = vmatpush1.msra.mxu0 0.0
      %557 = vmatprep.subr.mxu0 0.0
      %558 = vmatpush1.msra.mxu0 0.0
      %559 = vmatprep.subr.mxu0 0.0
      %560 = vmatpush1.msra.mxu0 0.0
      %561 = vmatprep.subr.mxu0 0.0
      %562 = vmatpush1.msra.mxu0 0.0
      %563 = vmatprep.subr.mxu0 0.0
      %564 = vmatpush1.msra.mxu0 0.0
      %565 = vmatprep.subr.mxu0 0.0
      %566 = vmatpush1.msra.mxu0 0.0
      %567 = vmatprep.subr.mxu0 0.0
      %568 = vmatpush1.msra.mxu0 0.0
      %569 = vmatprep.subr.mxu0 0.0
      %570 = vmatpush1.msra.mxu0 0.0
      %571 = vmatprep.mubr.f32.mxu0 0.0
      %572 = vmatmul.mubr.f32.gmra.mrb[0].mxu0 %v387
      %v573 = vpop.f32.mrb[0].mxu0
      %v574 = vadd.f32 %v504, %v573
      %v575 = vpop.f32.mrb[0].mxu0
      %576 = vdwg.mxu0
      %577 = vst [vmem:[%s330] sm:$0xff] %v574
      %vm578 = vcmp.ge.s32.totalorder %v345, 0
      %vm579 = vcmp.lt.s32.totalorder %v345, 4
      %vm580 = vmand %vm578, %vm579
      %v581 = vsel %vm580, %v574, 0.0
      %v582 = vrot.slane %v581, 4
      %v583 = vadd.f32 %v581, %v582
      %v584 = vrot.slane %v583, 2
      %v585 = vadd.f32 %v583, %v584
      %v586 = vrot.slane %v585, 1
      %v587 = vadd.f32 %v585, %v586
      %v588 = vmul.f32 %v581, %v581
      %v589 = vrot.slane %v588, 4
      %v590 = vadd.f32 %v588, %v589
      %v591 = vrot.slane %v590, 2
      %v592 = vadd.f32 %v590, %v591
      %v593 = vrot.slane %v592, 1
      %v594 = vadd.f32 %v592, %v593
      %vm595 = vcmp.eq.s32.totalorder %v341, 0
      %v596 = vsel %vm595, %v587, 0.0
      %vm597 = vcmp.eq.s32.totalorder %v341, 1
      %v598 = vsel %vm597, %v594, 0.0
      %v599 = vadd.f32 %v596, %v598
      %600 = vst [vmem:[%s337] sm:$0xff] %v599
      %p601 = scmp.lt.s32.totalorder %s22, 1
      %s602 = scalar_select %p601, %s22, 1
      %p603 = scmp.lt.s32.totalorder %s23, 0
      %s604 = scalar_select %p603, %s23, 0
      %s605 = sadd.s32 %s604, %s602
      %s606 = smul.addr %s605, 8
      %s607 = scalar_lea.vmem %s5, %s606
      %p608 = scmp.lt.s32.totalorder %s22, 1
      %s609 = scalar_select %p608, %s22, 1
      %p610 = scmp.lt.s32.totalorder %s23, 0
      %s611 = scalar_select %p610, %s23, 0
      %s612 = sadd.s32 %s611, %s609
      %s613 = smul.addr %s612, 8
      %s614 = scalar_lea.vmem %s6, %s613
      // Predicated region
      $region41: #{basic_block_forward_pallas.4} parent=39 // pred_check
        %p615 = pneg %p171
      $region42: #{basic_block_forward_pallas.4} parent=39 // pred_check_branch
        %617 = sbr.rel (%p615) target = $region44
      $region43: #{basic_block_forward_pallas.4} parent=39 // pred_region
        _
      $region44: #{basic_block_forward_pallas.4} parent=39 // pred_fallthru
        _
      // Predicated region
      $region45: #{basic_block_forward_pallas.4} parent=39 // pred_check
        %p618 = pneg %p199
      $region46: #{basic_block_forward_pallas.4} parent=39 // pred_check_branch
        %620 = sbr.rel (%p618) target = $region48
      $region47: #{basic_block_forward_pallas.4} parent=39 // pred_region
        _
      $region48: #{basic_block_forward_pallas.4} parent=39 // pred_fallthru
        _
    $region40: #{basic_block_forward_pallas.4} parent=5 // pred_fallthru
      _
    %p621 = scmp.le.s32.totalorder 2, %s13
    // Predicated region
    $region49: #{basic_block_forward_pallas.4} parent=5 // pred_check
      %p622 = pneg %p621
    $region50: #{basic_block_forward_pallas.4} parent=5 // pred_check_branch
      %624 = sbr.rel (%p622) target = $region52
    $region51: #{basic_block_forward_pallas.4} parent=5 // pred_region
      %s625 = ssub.s32 %s13, 2
      // Predicated region
      $region53: #{basic_block_forward_pallas.4} parent=51 // pred_check
        %p626 = pneg %p177
      $region54: #{basic_block_forward_pallas.4} parent=51 // pred_check_branch
        %628 = sbr.rel (%p626) target = $region56
      $region55: #{basic_block_forward_pallas.4} parent=51 // pred_region
        %p629 = scmp.lt.s32.totalorder %s24, 1
        %s630 = scalar_select %p629, %s24, 1
        %p631 = scmp.lt.s32.totalorder %s25, 0
        %s632 = scalar_select %p631, %s25, 0
        %s633 = sadd.s32 %s632, %s630
        %s634 = smul.addr %s633, 8
        %s635 = scalar_lea.vmem %s5, %s634
      $region56: #{basic_block_forward_pallas.4} parent=51 // pred_fallthru
        _
      // Predicated region
      $region57: #{basic_block_forward_pallas.4} parent=51 // pred_check
        %p636 = pneg %p205
      $region58: #{basic_block_forward_pallas.4} parent=51 // pred_check_branch
        %638 = sbr.rel (%p636) target = $region60
      $region59: #{basic_block_forward_pallas.4} parent=51 // pred_region
        %p639 = scmp.lt.s32.totalorder %s24, 1
        %s640 = scalar_select %p639, %s24, 1
        %p641 = scmp.lt.s32.totalorder %s25, 0
        %s642 = scalar_select %p641, %s25, 0
        %s643 = sadd.s32 %s642, %s640
        %s644 = smul.addr %s643, 8
        %s645 = scalar_lea.vmem %s6, %s644
      $region60: #{basic_block_forward_pallas.4} parent=51 // pred_fallthru
        _
    $region52: #{basic_block_forward_pallas.4} parent=5 // pred_fallthru
      _
  $region6: #{basic_block_forward_pallas.4} parent=0 // loop_footer
    %s17 = sadd.s32 1, %s13
  $region7: #{basic_block_forward_pallas.4} parent=0 // loop_footer_branch
    %12 = sbr.rel target = $region3
  $region8: #{basic_block_forward_pallas.4} parent=0 // loop_exit
    _

// kernel: basic_block_forward_pallas.3
$region0: #{basic_block_forward_pallas.3}
  #allocation0 [shape = 'u32[]', space=smem, size = 0x4, offset = 0x4, fixed_abs, tag = 'smem constant byte address 0x4 - core index']
  #allocation1 [shape = 'u32[144,128]{1,0:T(1,128)}', space=vmem, size = 0x12000, scoped, tag = 'internal scratch']
  %s0 = inlined_call_operand.vmem [shape: f32[2,16,128], index: 0, kind: input, shape index: {}, may-alias: {0,1}]
  %s1 = inlined_call_operand.vmem [shape: f32[2,16,128], index: 1, kind: input, shape index: {}, may-alias: {0,1}]
  %s2 = inlined_call_operand.vmem [shape: f32[256,256], index: 2, kind: input, shape index: {}]
  %s3 = inlined_call_operand.vmem [shape: f32[2,16,128], index: 3, kind: output, shape index: {0}]
  %s4 = inlined_call_operand.vmem [shape: f32[2,8,128], index: 4, kind: output, shape index: {1}]
  %s5 = inlined_call_operand.vmem [shape: f32[2,1,8,256], index: 5, kind: output, shape index: {2}]
  %6 = xla_tuple %s3, %s4, %s5
  %s7 = sld [smem:[#allocation0]]
  $region61: #{basic_block_forward_pallas.3} parent=0
    _
  %s9 = ssub.s32 1, %s7
  %s10 = scalar_select 0, %s9, %s7
  loop: start=0, step=1, limit=4
  $region2: #{basic_block_forward_pallas.3} parent=0 // loop_pre_header
    _
  $region3: #{basic_block_forward_pallas.3} parent=0 // loop_header
    %s12 = sphi 0, %s16
    %p13 = scmp.ge.s32.totalorder %s12, 4
    %s19 = sphi 0, %s31
    %s20 = sphi 0, %s27
    %s21 = sphi 0, %s19
    %s22 = sphi 0, %s20
    %s23 = sphi 0, %s21
    %s24 = sphi 0, %s22
    %s36 = sphi 0, %s38
    %s39 = sphi 0, %s36
    %s40 = sphi 0, %s39
    %s56 = sphi 0, %s40
    %s66 = sphi 0, %s68
    %s69 = sphi 0, %s66
    %s70 = sphi 0, %s69
    %s86 = sphi 0, %s70
    %s90 = sphi 0, %s90
    %s92 = sphi 0, %s90
    %s93 = sphi 0, %s92
    %s107 = sphi 0, %s93
    %s115 = sphi 0, %s117
    %s118 = sphi 0, %s115
    %s119 = sphi 0, %s118
    %s135 = sphi 0, %s119
    %s143 = sphi 0, %s145
    %s146 = sphi 0, %s143
    %s147 = sphi 0, %s146
    %s163 = sphi 0, %s147
    %s171 = sphi 0, %s173
    %s174 = sphi 0, %s171
    %s175 = sphi 0, %s174
    %s191 = sphi 0, %s175
  $region4: #{basic_block_forward_pallas.3} parent=0 // loop_header_branch
    %15 = sbr.rel (%p13) target = $region8
  $region5: #{basic_block_forward_pallas.3} parent=0 // loop_body
    %s17 = ssub.s32 %s12, 1
    %s18 = ssub.s32 %s12, 2
    %s25 = sadd.s32 1, %s20
    %p26 = scmp.ge.s32.totalorder %s25, 1
    %s27 = scalar_select %p26, 0, %s25
    %s28 = sadd.s32 1, %s19
    %s29 = scalar_select %p26, %s28, %s19
    %p30 = scmp.ge.s32.totalorder %s29, 2
    %s31 = scalar_select %p30, 0, %s29
    %s32 = ssub.s32 %s19, %s31
    %s33 = ssub.s32 %s20, %s27
    %s34 = sor.u32 %s32, %s33
    %p35 = scmp.eq.s32.totalorder %s34, 0
    %s37 = sadd.s32 %s36, 1
    %s38 = scalar_select %p35, %s36, %s37
    %p41 = pneg %p35
    %p42 = scmp.eq.s32.totalorder %s12, 1
    %p43 = por %p41, %p42
    %p44 = scmp.ne.s32.totalorder %s36, %s39
    %p45 = scmp.eq.s32.totalorder %s12, 0
    %p46 = por %p44, %p45
    %p47 = scmp.ne.s32.totalorder %s36, %s39
    %p48 = scmp.eq.s32.totalorder %s17, 1
    %p49 = por %p47, %p48
    %p50 = scmp.ne.s32.totalorder %s39, %s40
    %p51 = scmp.eq.s32.totalorder %s17, 0
    %p52 = por %p50, %p51
    %p53 = scmp.ne.s32.totalorder %s39, %s40
    %p54 = scmp.eq.s32.totalorder %s18, 1
    %p55 = por %p53, %p54
    %p57 = scmp.ne.s32.totalorder %s40, %s56
    %p58 = scmp.eq.s32.totalorder %s18, 0
    %p59 = por %p57, %p58
    %s60 = sadd.s32 %s20, 1
    %s61 = sadd.s32 %s27, 1
    %s62 = ssub.s32 %s19, %s31
    %s63 = ssub.s32 %s60, %s61
    %s64 = sor.u32 %s62, %s63
    %p65 = scmp.eq.s32.totalorder %s64, 0
    %s67 = sadd.s32 %s66, 1
    %s68 = scalar_select %p65, %s66, %s67
    %p71 = pneg %p65
    %p72 = scmp.eq.s32.totalorder %s12, 1
    %p73 = por %p71, %p72
    %p74 = scmp.ne.s32.totalorder %s66, %s69
    %p75 = scmp.eq.s32.totalorder %s12, 0
    %p76 = por %p74, %p75
    %p77 = scmp.ne.s32.totalorder %s66, %s69
    %p78 = scmp.eq.s32.totalorder %s17, 1
    %p79 = por %p77, %p78
    %p80 = scmp.ne.s32.totalorder %s69, %s70
    %p81 = scmp.eq.s32.totalorder %s17, 0
    %p82 = por %p80, %p81
    %p83 = scmp.ne.s32.totalorder %s69, %s70
    %p84 = scmp.eq.s32.totalorder %s18, 1
    %p85 = por %p83, %p84
    %p87 = scmp.ne.s32.totalorder %s70, %s86
    %p88 = scmp.eq.s32.totalorder %s18, 0
    %p89 = por %p87, %p88
    %s91 = sadd.s32 %s90, 1
    %p94 = scmp.eq.s32.totalorder %s12, 1
    %p95 = scmp.ne.s32.totalorder %s90, %s92
    %p96 = scmp.eq.s32.totalorder %s12, 0
    %p97 = por %p95, %p96
    %p98 = scmp.ne.s32.totalorder %s90, %s92
    %p99 = scmp.eq.s32.totalorder %s17, 1
    %p100 = por %p98, %p99
    %p101 = scmp.ne.s32.totalorder %s92, %s93
    %p102 = scmp.eq.s32.totalorder %s17, 0
    %p103 = por %p101, %p102
    %p104 = scmp.ne.s32.totalorder %s92, %s93
    %p105 = scmp.eq.s32.totalorder %s18, 1
    %p106 = por %p104, %p105
    %p108 = scmp.ne.s32.totalorder %s93, %s107
    %p109 = scmp.eq.s32.totalorder %s18, 0
    %p110 = por %p108, %p109
    %s111 = ssub.s32 %s19, %s31
    %s112 = ssub.s32 %s20, %s27
    %s113 = sor.u32 %s111, %s112
    %p114 = scmp.eq.s32.totalorder %s113, 0
    %s116 = sadd.s32 %s115, 1
    %s117 = scalar_select %p114, %s115, %s116
    %p120 = pneg %p114
    %p121 = scmp.eq.s32.totalorder %s12, 1
    %p122 = por %p120, %p121
    %p123 = scmp.ne.s32.totalorder %s115, %s118
    %p124 = scmp.eq.s32.totalorder %s12, 0
    %p125 = por %p123, %p124
    %p126 = scmp.ne.s32.totalorder %s115, %s118
    %p127 = scmp.eq.s32.totalorder %s17, 1
    %p128 = por %p126, %p127
    %p129 = scmp.ne.s32.totalorder %s118, %s119
    %p130 = scmp.eq.s32.totalorder %s17, 0
    %p131 = por %p129, %p130
    %p132 = scmp.ne.s32.totalorder %s118, %s119
    %p133 = scmp.eq.s32.totalorder %s18, 1
    %p134 = por %p132, %p133
    %p136 = scmp.ne.s32.totalorder %s119, %s135
    %p137 = scmp.eq.s32.totalorder %s18, 0
    %p138 = por %p136, %p137
    %s139 = ssub.s32 %s19, %s31
    %s140 = ssub.s32 %s20, %s27
    %s141 = sor.u32 %s139, %s140
    %p142 = scmp.eq.s32.totalorder %s141, 0
    %s144 = sadd.s32 %s143, 1
    %s145 = scalar_select %p142, %s143, %s144
    %p148 = pneg %p142
    %p149 = scmp.eq.s32.totalorder %s12, 1
    %p150 = por %p148, %p149
    %p151 = scmp.ne.s32.totalorder %s143, %s146
    %p152 = scmp.eq.s32.totalorder %s12, 0
    %p153 = por %p151, %p152
    %p154 = scmp.ne.s32.totalorder %s143, %s146
    %p155 = scmp.eq.s32.totalorder %s17, 1
    %p156 = por %p154, %p155
    %p157 = scmp.ne.s32.totalorder %s146, %s147
    %p158 = scmp.eq.s32.totalorder %s17, 0
    %p159 = por %p157, %p158
    %p160 = scmp.ne.s32.totalorder %s146, %s147
    %p161 = scmp.eq.s32.totalorder %s18, 1
    %p162 = por %p160, %p161
    %p164 = scmp.ne.s32.totalorder %s147, %s163
    %p165 = scmp.eq.s32.totalorder %s18, 0
    %p166 = por %p164, %p165
    %s167 = ssub.s32 %s19, %s31
    %s168 = ssub.s32 %s20, %s27
    %s169 = sor.u32 %s167, %s168
    %p170 = scmp.eq.s32.totalorder %s169, 0
    %s172 = sadd.s32 %s171, 1
    %s173 = scalar_select %p170, %s171, %s172
    %p176 = pneg %p170
    %p177 = scmp.eq.s32.totalorder %s12, 1
    %p178 = por %p176, %p177
    %p179 = scmp.ne.s32.totalorder %s171, %s174
    %p180 = scmp.eq.s32.totalorder %s12, 0
    %p181 = por %p179, %p180
    %p182 = scmp.ne.s32.totalorder %s171, %s174
    %p183 = scmp.eq.s32.totalorder %s17, 1
    %p184 = por %p182, %p183
    %p185 = scmp.ne.s32.totalorder %s174, %s175
    %p186 = scmp.eq.s32.totalorder %s17, 0
    %p187 = por %p185, %p186
    %p188 = scmp.ne.s32.totalorder %s174, %s175
    %p189 = scmp.eq.s32.totalorder %s18, 1
    %p190 = por %p188, %p189
    %p192 = scmp.ne.s32.totalorder %s175, %s191
    %p193 = scmp.eq.s32.totalorder %s18, 0
    %p194 = por %p192, %p193
    %p195 = scmp.le.s32.totalorder 1, %s12
    %p196 = scmp.lt.s32.totalorder %s12, 3
    %p197 = pnand %p195, %p196
    %p198 = pneg %p197
    // Predicated region
    $region9: #{basic_block_forward_pallas.3} parent=5 // pred_check
      _
    $region10: #{basic_block_forward_pallas.3} parent=5 // pred_check_branch
      %200 = sbr.rel (%p197) target = $region12
    $region11: #{basic_block_forward_pallas.3} parent=5 // pred_region
      %s201 = ssub.s32 %s12, 1
      // Predicated region
      $region13: #{basic_block_forward_pallas.3} parent=11 // pred_check
        %p202 = pneg %p103
      $region14: #{basic_block_forward_pallas.3} parent=11 // pred_check_branch
        %204 = sbr.rel (%p202) target = $region16
      $region15: #{basic_block_forward_pallas.3} parent=11 // pred_region
        _
      $region16: #{basic_block_forward_pallas.3} parent=11 // pred_fallthru
        _
    $region12: #{basic_block_forward_pallas.3} parent=5 // pred_fallthru
      _
    %p205 = scmp.lt.s32.totalorder %s12, 2
    // Predicated region
    $region17: #{basic_block_forward_pallas.3} parent=5 // pred_check
      %p206 = pneg %p205
    $region18: #{basic_block_forward_pallas.3} parent=5 // pred_check_branch
      %208 = sbr.rel (%p206) target = $region20
    $region19: #{basic_block_forward_pallas.3} parent=5 // pred_region
      // Predicated region
      $region21: #{basic_block_forward_pallas.3} parent=19 // pred_check
        %p209 = pneg %p46
      $region22: #{basic_block_forward_pallas.3} parent=19 // pred_check_branch
        %211 = sbr.rel (%p209) target = $region24
      $region23: #{basic_block_forward_pallas.3} parent=19 // pred_region
        %p212 = scmp.lt.s32.totalorder %s19, 1
        %s213 = scalar_select %p212, %s19, 1
        %p214 = scmp.lt.s32.totalorder %s20, 1
        %s215 = scalar_select %p214, %s20, 1
        %s216 = smul.addr %s213, 2
        %s217 = sadd.s32 %s215, %s216
        %s218 = smul.addr %s217, 8
        %s219 = scalar_lea.vmem %s0, %s218
      $region24: #{basic_block_forward_pallas.3} parent=19 // pred_fallthru
        _
      // Predicated region
      $region25: #{basic_block_forward_pallas.3} parent=19 // pred_check
        %p220 = pneg %p76
      $region26: #{basic_block_forward_pallas.3} parent=19 // pred_check_branch
        %222 = sbr.rel (%p220) target = $region28
      $region27: #{basic_block_forward_pallas.3} parent=19 // pred_region
        %s223 = sadd.s32 %s20, 1
        %p224 = scmp.lt.s32.totalorder %s19, 1
        %s225 = scalar_select %p224, %s19, 1
        %p226 = scmp.lt.s32.totalorder %s223, 1
        %s227 = scalar_select %p226, %s223, 1
        %s228 = smul.addr %s225, 2
        %s229 = sadd.s32 %s227, %s228
        %s230 = smul.addr %s229, 8
        %s231 = scalar_lea.vmem %s1, %s230
        %s232 = sadd.s32 %s20, 1
      $region28: #{basic_block_forward_pallas.3} parent=19 // pred_fallthru
        _
    $region20: #{basic_block_forward_pallas.3} parent=5 // pred_fallthru
      _
    %p233 = scmp.le.s32.totalorder 1, %s12
    %p234 = scmp.lt.s32.totalorder %s12, 3
    %p235 = pnand %p233, %p234
    %p236 = pneg %p235
    // Predicated region
    $region29: #{basic_block_forward_pallas.3} parent=5 // pred_check
      _
    $region30: #{basic_block_forward_pallas.3} parent=5 // pred_check_branch
      %238 = sbr.rel (%p235) target = $region32
    $region31: #{basic_block_forward_pallas.3} parent=5 // pred_region
      %s239 = ssub.s32 %s12, 1
      %p240 = scmp.lt.s32.totalorder %s21, 1
      %s241 = scalar_select %p240, %s21, 1
      %p242 = scmp.lt.s32.totalorder %s22, 1
      %s243 = scalar_select %p242, %s22, 1
      %s244 = smul.addr %s241, 2
      %s245 = sadd.s32 %s243, %s244
      %s246 = smul.addr %s245, 8
      %s247 = scalar_lea.vmem %s0, %s246
      %p248 = pneg %p52
      %p249 = pneg %p49
      %s250 = sadd.s32 %s22, 1
      %p251 = scmp.lt.s32.totalorder %s21, 1
      %s252 = scalar_select %p251, %s21, 1
      %p253 = scmp.lt.s32.totalorder %s250, 1
      %s254 = scalar_select %p253, %s250, 1
      %s255 = smul.addr %s252, 2
      %s256 = sadd.s32 %s254, %s255
      %s257 = smul.addr %s256, 8
      %s258 = scalar_lea.vmem %s1, %s257
      %p259 = pneg %p82
      %p260 = pneg %p79
      %p261 = pneg %p103
      %p262 = pneg %p100
      %p263 = pneg %p131
      %p264 = pneg %p128
      %p265 = scmp.lt.s32.totalorder %s21, 1
      %s266 = scalar_select %p265, %s21, 1
      %p267 = scmp.lt.s32.totalorder %s22, 1
      %s268 = scalar_select %p267, %s22, 1
      %s269 = smul.addr %s266, 2
      %s270 = sadd.s32 %s268, %s269
      %s271 = smul.addr %s270, 8
      %s272 = scalar_lea.vmem %s3, %s271
      %p273 = pneg %p159
      %p274 = pneg %p156
      %p275 = scmp.lt.s32.totalorder %s21, 1
      %s276 = scalar_select %p275, %s21, 1
      %p277 = scmp.lt.s32.totalorder %s22, 0
      %s278 = scalar_select %p277, %s22, 0
      %s279 = sadd.s32 %s278, %s276
      %s280 = smul.addr %s279, 8
      %s281 = scalar_lea.vmem %s4, %s280
      %p282 = pneg %p187
      %p283 = pneg %p184
      %p284 = scmp.lt.s32.totalorder %s21, 1
      %s285 = scalar_select %p284, %s21, 1
      %p286 = scmp.lt.s32.totalorder %s22, 0
      %s287 = scalar_select %p286, %s22, 0
      %s288 = smul.addr %s287, 2
      %s289 = smul.addr %s285, 2
      %s290 = sadd.s32 %s288, %s289
      %s291 = smul.addr %s290, 8
      %s292 = scalar_lea.vmem %s5, %s291
      %p293 = scmp.lt.s32.totalorder %s21, 1
      %s294 = scalar_select %p293, %s21, 1
      %p295 = scmp.lt.s32.totalorder %s22, 1
      %s296 = scalar_select %p295, %s22, 1
      %s297 = smul.addr %s294, 2
      %s298 = sadd.s32 %s296, %s297
      %s299 = smul.addr %s298, 8
      %s300 = scalar_lea.vmem %s0, %s299
      %s301 = sadd.s32 %s22, 1
      %p302 = scmp.lt.s32.totalorder %s21, 1
      %s303 = scalar_select %p302, %s21, 1
      %p304 = scmp.lt.s32.totalorder %s301, 1
      %s305 = scalar_select %p304, %s301, 1
      %s306 = smul.addr %s303, 2
      %s307 = sadd.s32 %s305, %s306
      %s308 = smul.addr %s307, 8
      %s309 = scalar_lea.vmem %s1, %s308
      %s310 = sadd.s32 %s22, 1
      %p311 = scmp.lt.s32.totalorder %s21, 1
      %s312 = scalar_select %p311, %s21, 1
      %p313 = scmp.lt.s32.totalorder %s22, 1
      %s314 = scalar_select %p313, %s22, 1
      %s315 = smul.addr %s312, 2
      %s316 = sadd.s32 %s314, %s315
      %s317 = smul.addr %s316, 8
      %s318 = scalar_lea.vmem %s3, %s317
      %p319 = scmp.lt.s32.totalorder %s21, 1
      %s320 = scalar_select %p319, %s21, 1
      %p321 = scmp.lt.s32.totalorder %s22, 0
      %s322 = scalar_select %p321, %s22, 0
      %s323 = sadd.s32 %s322, %s320
      %s324 = smul.addr %s323, 8
      %s325 = scalar_lea.vmem %s4, %s324
      %p326 = scmp.lt.s32.totalorder %s21, 1
      %s327 = scalar_select %p326, %s21, 1
      %p328 = scmp.lt.s32.totalorder %s22, 0
      %s329 = scalar_select %p328, %s22, 0
      %s330 = smul.addr %s329, 2
      %s331 = smul.addr %s327, 2
      %s332 = sadd.s32 %s330, %s331
      %s333 = smul.addr %s332, 8
      %s334 = scalar_lea.vmem %s5, %s333
      %v335 = vld [vmem:[%s300] sm:$0xff]
      %v336 = vld [vmem:[%s309] sm:$0xff]
      %vm339 = vcmask 1046528
      %v340 = vrot.slane %v335, 1
      %v341 = vrot.slane %v336, 1
      %v342 = vsel %vm339, %v340, %v341
      %v344 = vld [vmem:[%s2] sm:$0xff]
      %v345 = vld [vmem:[%s2 + $0x8] sm:$0xff]
      %v346 = vld [vmem:[%s2 + $0x10] sm:$0xff]
      %v347 = vld [vmem:[%s2 + $0x18] sm:$0xff]
      %v348 = vld [vmem:[%s2 + $0x20] sm:$0xff]
      %v349 = vld [vmem:[%s2 + $0x28] sm:$0xff]
      %v350 = vld [vmem:[%s2 + $0x30] sm:$0xff]
      %v351 = vld [vmem:[%s2 + $0x38] sm:$0xff]
      %v352 = vld [vmem:[%s2 + $0x40] sm:$0xff]
      %v353 = vld [vmem:[%s2 + $0x48] sm:$0xff]
      %v354 = vld [vmem:[%s2 + $0x50] sm:$0xff]
      %v355 = vld [vmem:[%s2 + $0x58] sm:$0xff]
      %v356 = vld [vmem:[%s2 + $0x60] sm:$0xff]
      %v357 = vld [vmem:[%s2 + $0x68] sm:$0xff]
      %v358 = vld [vmem:[%s2 + $0x70] sm:$0xff]
      %v359 = vld [vmem:[%s2 + $0x78] sm:$0xff]
      %v360 = vld [vmem:[%s2 + $0x80] sm:$0xff]
      %v361 = vld [vmem:[%s2 + $0x88] sm:$0xff]
      %v362 = vld [vmem:[%s2 + $0x90] sm:$0xff]
      %v363 = vld [vmem:[%s2 + $0x98] sm:$0xff]
      %v364 = vld [vmem:[%s2 + $0xa0] sm:$0xff]
      %v365 = vld [vmem:[%s2 + $0xa8] sm:$0xff]
      %v366 = vld [vmem:[%s2 + $0xb0] sm:$0xff]
      %v367 = vld [vmem:[%s2 + $0xb8] sm:$0xff]
      %v368 = vld [vmem:[%s2 + $0xc0] sm:$0xff]
      %v369 = vld [vmem:[%s2 + $0xc8] sm:$0xff]
      %v370 = vld [vmem:[%s2 + $0xd0] sm:$0xff]
      %v371 = vld [vmem:[%s2 + $0xd8] sm:$0xff]
      %v372 = vld [vmem:[%s2 + $0xe0] sm:$0xff]
      %v373 = vld [vmem:[%s2 + $0xe8] sm:$0xff]
      %v374 = vld [vmem:[%s2 + $0xf0] sm:$0xff]
      %v375 = vld [vmem:[%s2 + $0xf8] sm:$0xff]
      %v376 = vld [vmem:[%s2 + $0x100] sm:$0xff]
      %v377 = vld [vmem:[%s2 + $0x108] sm:$0xff]
      %v378 = vld [vmem:[%s2 + $0x110] sm:$0xff]
      %v379 = vld [vmem:[%s2 + $0x118] sm:$0xff]
      %v380 = vld [vmem:[%s2 + $0x120] sm:$0xff]
      %v381 = vld [vmem:[%s2 + $0x128] sm:$0xff]
      %v382 = vld [vmem:[%s2 + $0x130] sm:$0xff]
      %v383 = vld [vmem:[%s2 + $0x138] sm:$0xff]
      %v384 = vld [vmem:[%s2 + $0x140] sm:$0xff]
      %v385 = vld [vmem:[%s2 + $0x148] sm:$0xff]
      %v386 = vld [vmem:[%s2 + $0x150] sm:$0xff]
      %v387 = vld [vmem:[%s2 + $0x158] sm:$0xff]
      %v388 = vld [vmem:[%s2 + $0x160] sm:$0xff]
      %v389 = vld [vmem:[%s2 + $0x168] sm:$0xff]
      %v390 = vld [vmem:[%s2 + $0x170] sm:$0xff]
      %v391 = vld [vmem:[%s2 + $0x178] sm:$0xff]
      %v392 = vld [vmem:[%s2 + $0x180] sm:$0xff]
      %v393 = vld [vmem:[%s2 + $0x188] sm:$0xff]
      %v394 = vld [vmem:[%s2 + $0x190] sm:$0xff]
      %v395 = vld [vmem:[%s2 + $0x198] sm:$0xff]
      %v396 = vld [vmem:[%s2 + $0x1a0] sm:$0xff]
      %v397 = vld [vmem:[%s2 + $0x1a8] sm:$0xff]
      %v398 = vld [vmem:[%s2 + $0x1b0] sm:$0xff]
      %v399 = vld [vmem:[%s2 + $0x1b8] sm:$0xff]
      %v400 = vld [vmem:[%s2 + $0x1c0] sm:$0xff]
      %v401 = vld [vmem:[%s2 + $0x1c8] sm:$0xff]
      %v402 = vld [vmem:[%s2 + $0x1d0] sm:$0xff]
      %v403 = vld [vmem:[%s2 + $0x1d8] sm:$0xff]
      %v404 = vld [vmem:[%s2 + $0x1e0] sm:$0xff]
      %v405 = vld [vmem:[%s2 + $0x1e8] sm:$0xff]
      %v406 = vld [vmem:[%s2 + $0x1f0] sm:$0xff]
      %v407 = vld [vmem:[%s2 + $0x1f8] sm:$0xff]
      %408 = vmatprep.subr.mxu0 %v345
      %409 = vmatpush1.msra.mxu0 %v344
      %410 = vmatprep.subr.mxu0 %v347
      %411 = vmatpush1.msra.mxu0 %v346
      %412 = vmatprep.subr.mxu0 %v349
      %413 = vmatpush1.msra.mxu0 %v348
      %414 = vmatprep.subr.mxu0 %v351
      %415 = vmatpush1.msra.mxu0 %v350
      %416 = vmatprep.subr.mxu0 %v353
      %417 = vmatpush1.msra.mxu0 %v352
      %418 = vmatprep.subr.mxu0 %v355
      %419 = vmatpush1.msra.mxu0 %v354
      %420 = vmatprep.subr.mxu0 %v357
      %421 = vmatpush1.msra.mxu0 %v356
      %422 = vmatprep.subr.mxu0 %v359
      %423 = vmatpush1.msra.mxu0 %v358
      %424 = vmatprep.subr.mxu0 %v361
      %425 = vmatpush1.msra.mxu0 %v360
      %426 = vmatprep.subr.mxu0 %v363
      %427 = vmatpush1.msra.mxu0 %v362
      %428 = vmatprep.subr.mxu0 %v365
      %429 = vmatpush1.msra.mxu0 %v364
      %430 = vmatprep.subr.mxu0 %v367
      %431 = vmatpush1.msra.mxu0 %v366
      %432 = vmatprep.subr.mxu0 %v369
      %433 = vmatpush1.msra.mxu0 %v368
      %434 = vmatprep.subr.mxu0 %v371
      %435 = vmatpush1.msra.mxu0 %v370
      %436 = vmatprep.subr.mxu0 %v373
      %437 = vmatpush1.msra.mxu0 %v372
      %438 = vmatprep.subr.mxu0 %v375
      %439 = vmatpush1.msra.mxu0 %v374
      %440 = vmatprep.subr.mxu0 %v377
      %441 = vmatpush1.msra.mxu0 %v376
      %442 = vmatprep.subr.mxu0 %v379
      %443 = vmatpush1.msra.mxu0 %v378
      %444 = vmatprep.subr.mxu0 %v381
      %445 = vmatpush1.msra.mxu0 %v380
      %446 = vmatprep.subr.mxu0 %v383
      %447 = vmatpush1.msra.mxu0 %v382
      %448 = vmatprep.subr.mxu0 %v385
      %449 = vmatpush1.msra.mxu0 %v384
      %450 = vmatprep.subr.mxu0 %v387
      %451 = vmatpush1.msra.mxu0 %v386
      %452 = vmatprep.subr.mxu0 %v389
      %453 = vmatpush1.msra.mxu0 %v388
      %454 = vmatprep.subr.mxu0 %v391
      %455 = vmatpush1.msra.mxu0 %v390
      %456 = vmatprep.subr.mxu0 %v393
      %457 = vmatpush1.msra.mxu0 %v392
      %458 = vmatprep.subr.mxu0 %v395
      %459 = vmatpush1.msra.mxu0 %v394
      %460 = vmatprep.subr.mxu0 %v397
      %461 = vmatpush1.msra.mxu0 %v396
      %462 = vmatprep.subr.mxu0 %v399
      %463 = vmatpush1.msra.mxu0 %v398
      %464 = vmatprep.subr.mxu0 %v401
      %465 = vmatpush1.msra.mxu0 %v400
      %466 = vmatprep.subr.mxu0 %v403
      %467 = vmatpush1.msra.mxu0 %v402
      %468 = vmatprep.subr.mxu0 %v405
      %469 = vmatpush1.msra.mxu0 %v404
      %470 = vmatprep.subr.mxu0 %v407
      %471 = vmatpush1.msra.mxu0 %v406
      %472 = vmatprep.mubr.f32.mxu0 %v342
      %473 = vmatmul.mubr.f32.gmra.mrb[0].mxu0 %v335
      %v474 = vpop.f32.mrb[0].mxu0
      %v475 = vadd.f32 0.0, %v474
      %v476 = vpop.f32.mrb[0].mxu0
      %v477 = vadd.f32 0.0, %v476
      %478 = vdwg.mxu0
      %479 = vst [vmem:[%s318] sm:$0xff] %v475
      %480 = vst [vmem:[%s325] sm:$0xff] %v477
      %v481 = vlaneseq
      %v482 = vshrl.u32 %v481, 7
      %s483 = smul.u32 %s22, 8
      %v484 = vstv %s483
      %v485 = vadd.s32 %v482, %v484
      %v486 = vlaneseq
      %v487 = vand.u32 %v486, 127
      %v488 = vadd.s32 %v487, 128
      %vm489 = vcmp.lt.s32.totalorder %v487, 128
      %vm490 = vcmp.lt.s32.totalorder %v488, 128
      %v491 = vsel %vm489, 1, 0
      %v492 = vsel %vm490, 1, 0
      %vm493 = vcmp.ge.s32.totalorder %v485, %v491
      %vm494 = vcmp.ge.s32.totalorder %v485, %v492
      %v495 = vadd.s32 %v491, 4
      %v496 = vadd.s32 %v492, 4
      %vm497 = vcmp.lt.s32.totalorder %v485, %v495
      %vm498 = vcmp.lt.s32.totalorder %v485, %v496
      %vm499 = vmand %vm493, %vm497
      %vm500 = vmand %vm494, %vm498
      %v501 = vsel %vm499, %v475, 0.0
      %v502 = vsel %vm500, %v477, 0.0
      %v503 = vrot.slane %v501, 4
      %v504 = vadd.f32 %v501, %v503
      %v505 = vrot.slane %v504, 2
      %v506 = vadd.f32 %v504, %v505
      %v507 = vrot.slane %v506, 1
      %v508 = vadd.f32 %v506, %v507
      %v509 = vrot.slane %v502, 4
      %v510 = vadd.f32 %v502, %v509
      %v511 = vrot.slane %v510, 2
      %v512 = vadd.f32 %v510, %v511
      %v513 = vrot.slane %v512, 1
      %v514 = vadd.f32 %v512, %v513
      %v515 = vmul.f32 %v501, %v501
      %v516 = vmul.f32 %v502, %v502
      %v517 = vrot.slane %v515, 4
      %v518 = vadd.f32 %v515, %v517
      %v519 = vrot.slane %v518, 2
      %v520 = vadd.f32 %v518, %v519
      %v521 = vrot.slane %v520, 1
      %v522 = vadd.f32 %v520, %v521
      %v523 = vrot.slane %v516, 4
      %v524 = vadd.f32 %v516, %v523
      %v525 = vrot.slane %v524, 2
      %v526 = vadd.f32 %v524, %v525
      %v527 = vrot.slane %v526, 1
      %v528 = vadd.f32 %v526, %v527
      %vm529 = vcmp.eq.s32.totalorder %v482, 0
      %v530 = vsel %vm529, %v508, 0.0
      %v531 = vsel %vm529, %v514, 0.0
      %vm532 = vcmp.eq.s32.totalorder %v482, 1
      %v533 = vsel %vm532, %v522, 0.0
      %v534 = vsel %vm532, %v528, 0.0
      %v535 = vadd.f32 %v530, %v533
      %v536 = vadd.f32 %v531, %v534
      %537 = vst [vmem:[%s334] sm:$0xff] %v535
      %538 = vst [vmem:[%s334 + $0x8] sm:$0xff] %v536
      %p539 = scmp.lt.s32.totalorder %s21, 1
      %s540 = scalar_select %p539, %s21, 1
      %p541 = scmp.lt.s32.totalorder %s22, 1
      %s542 = scalar_select %p541, %s22, 1
      %s543 = smul.addr %s540, 2
      %s544 = sadd.s32 %s542, %s543
      %s545 = smul.addr %s544, 8
      %s546 = scalar_lea.vmem %s3, %s545
      %p547 = scmp.lt.s32.totalorder %s21, 1
      %s548 = scalar_select %p547, %s21, 1
      %p549 = scmp.lt.s32.totalorder %s22, 0
      %s550 = scalar_select %p549, %s22, 0
      %s551 = sadd.s32 %s550, %s548
      %s552 = smul.addr %s551, 8
      %s553 = scalar_lea.vmem %s4, %s552
      %p554 = scmp.lt.s32.totalorder %s21, 1
      %s555 = scalar_select %p554, %s21, 1
      %p556 = scmp.lt.s32.totalorder %s22, 0
      %s557 = scalar_select %p556, %s22, 0
      %s558 = smul.addr %s557, 2
      %s559 = smul.addr %s555, 2
      %s560 = sadd.s32 %s558, %s559
      %s561 = smul.addr %s560, 8
      %s562 = scalar_lea.vmem %s5, %s561
      // Predicated region
      $region33: #{basic_block_forward_pallas.3} parent=31 // pred_check
        %p563 = pneg %p128
      $region34: #{basic_block_forward_pallas.3} parent=31 // pred_check_branch
        %565 = sbr.rel (%p563) target = $region36
      $region35: #{basic_block_forward_pallas.3} parent=31 // pred_region
        _
      $region36: #{basic_block_forward_pallas.3} parent=31 // pred_fallthru
        _
      // Predicated region
      $region37: #{basic_block_forward_pallas.3} parent=31 // pred_check
        %p566 = pneg %p156
      $region38: #{basic_block_forward_pallas.3} parent=31 // pred_check_branch
        %568 = sbr.rel (%p566) target = $region40
      $region39: #{basic_block_forward_pallas.3} parent=31 // pred_region
        _
      $region40: #{basic_block_forward_pallas.3} parent=31 // pred_fallthru
        _
      // Predicated region
      $region41: #{basic_block_forward_pallas.3} parent=31 // pred_check
        %p569 = pneg %p184
      $region42: #{basic_block_forward_pallas.3} parent=31 // pred_check_branch
        %571 = sbr.rel (%p569) target = $region44
      $region43: #{basic_block_forward_pallas.3} parent=31 // pred_region
        _
      $region44: #{basic_block_forward_pallas.3} parent=31 // pred_fallthru
        _
    $region32: #{basic_block_forward_pallas.3} parent=5 // pred_fallthru
      _
    %p572 = scmp.le.s32.totalorder 2, %s12
    // Predicated region
    $region45: #{basic_block_forward_pallas.3} parent=5 // pred_check
      %p573 = pneg %p572
    $region46: #{basic_block_forward_pallas.3} parent=5 // pred_check_branch
      %575 = sbr.rel (%p573) target = $region48
    $region47: #{basic_block_forward_pallas.3} parent=5 // pred_region
      %s576 = ssub.s32 %s12, 2
      // Predicated region
      $region49: #{basic_block_forward_pallas.3} parent=47 // pred_check
        %p577 = pneg %p134
      $region50: #{basic_block_forward_pallas.3} parent=47 // pred_check_branch
        %579 = sbr.rel (%p577) target = $region52
      $region51: #{basic_block_forward_pallas.3} parent=47 // pred_region
        %p580 = scmp.lt.s32.totalorder %s23, 1
        %s581 = scalar_select %p580, %s23, 1
        %p582 = scmp.lt.s32.totalorder %s24, 1
        %s583 = scalar_select %p582, %s24, 1
        %s584 = smul.addr %s581, 2
        %s585 = sadd.s32 %s583, %s584
        %s586 = smul.addr %s585, 8
        %s587 = scalar_lea.vmem %s3, %s586
      $region52: #{basic_block_forward_pallas.3} parent=47 // pred_fallthru
        _
      // Predicated region
      $region53: #{basic_block_forward_pallas.3} parent=47 // pred_check
        %p588 = pneg %p162
      $region54: #{basic_block_forward_pallas.3} parent=47 // pred_check_branch
        %590 = sbr.rel (%p588) target = $region56
      $region55: #{basic_block_forward_pallas.3} parent=47 // pred_region
        %p591 = scmp.lt.s32.totalorder %s23, 1
        %s592 = scalar_select %p591, %s23, 1
        %p593 = scmp.lt.s32.totalorder %s24, 0
        %s594 = scalar_select %p593, %s24, 0
        %s595 = sadd.s32 %s594, %s592
        %s596 = smul.addr %s595, 8
        %s597 = scalar_lea.vmem %s4, %s596
      $region56: #{basic_block_forward_pallas.3} parent=47 // pred_fallthru
        _
      // Predicated region
      $region57: #{basic_block_forward_pallas.3} parent=47 // pred_check
        %p598 = pneg %p190
      $region58: #{basic_block_forward_pallas.3} parent=47 // pred_check_branch
        %600 = sbr.rel (%p598) target = $region60
      $region59: #{basic_block_forward_pallas.3} parent=47 // pred_region
        %p601 = scmp.lt.s32.totalorder %s23, 1
        %s602 = scalar_select %p601, %s23, 1
        %p603 = scmp.lt.s32.totalorder %s24, 0
        %s604 = scalar_select %p603, %s24, 0
        %s605 = smul.addr %s604, 2
        %s606 = smul.addr %s602, 2
        %s607 = sadd.s32 %s605, %s606
        %s608 = smul.addr %s607, 8
        %s609 = scalar_lea.vmem %s5, %s608
      $region60: #{basic_block_forward_pallas.3} parent=47 // pred_fallthru
        _
    $region48: #{basic_block_forward_pallas.3} parent=5 // pred_fallthru
      _
  $region6: #{basic_block_forward_pallas.3} parent=0 // loop_footer
    %s16 = sadd.s32 1, %s12
  $region7: #{basic_block_forward_pallas.3} parent=0 // loop_footer_branch
    %11 = sbr.rel target = $region3
  $region8: #{basic_block_forward_pallas.3} parent=0 // loop_exit
    _

</llo_original>
